<compile_context>
chip_gen: v7x
topology: tpu7x:2x2x1
jax: 0.10.0
libtpu: 0.0.40
codegen_flags: <defaults>
</compile_context>

<pallas_src>
import functools

import jax
import jax.numpy as jnp
from jax import lax
from jax.experimental import pallas as pl
from jax.experimental.pallas import tpu as pltpu


def _asap_kernel(x_ref, c_ref, p_ref, v_ref, vt_ref, nbr_ref, w_ref,
                 energy_ref, gx_ref, dq_scr, gq_scr, *, n, n_comp, asap_weight):
    """Grid axis = neighbor slot j (slot-major edge layout)."""
    j = pl.program_id(0)
    last = pl.num_programs(0) - 1

    # ---- Stage 1 (once): eigen reconstruction, dq = decoder(x) - xyz1 --------
    @pl.when(j == 0)
    def _init():
        d = x_ref[...] - c_ref[...]                                # (3, N)
        coeff = jnp.zeros((1, n_comp), jnp.float32)
        for c in range(3):                                         # coeff = (x-c) @ V
            coeff = coeff + lax.dot_general(
                d[c:c + 1, :], v_ref[c], (((1,), (1,)), ((), ())),
                preferred_element_type=jnp.float32)                # (1, nComp)
        rows = []
        for c in range(3):                                         # q = c + coeff @ VT
            rows.append(c_ref[c:c + 1, :] - p_ref[c:c + 1, :]
                        + jnp.dot(coeff, vt_ref[c],
                                  preferred_element_type=jnp.float32))
        dq_scr[...] = jnp.concatenate(rows, axis=0)                # one full (3,N) store
        gq_scr[...] = jnp.zeros_like(gq_scr)
        energy_ref[...] = jnp.zeros_like(energy_ref)

    # ---- Stage 2 (per slot j): edge energy + gradient wrt q -------------------
    dq = dq_scr[...]                                               # (3, N) f32
    nbr = nbr_ref[0]                                               # (1, N) int32
    w = w_ref[0]                                                   # (1, N) f32 (masked)

    # One-hot^T[v, i] = [v == nbr_j(i)], built directly in bf16 (0/1 exact).
    row = lax.broadcasted_iota(jnp.int32, (n, n), 0)
    onehot_t = (row == nbr).astype(jnp.bfloat16)                   # (N_vtx, N_edge)

    # Gather: dq at the neighbor of each source vertex (bf16 MXU, f32 acc).
    dq_nbr = jnp.dot(dq.astype(jnp.bfloat16), onehot_t,
                     preferred_element_type=jnp.float32)           # (3, N)
    # Source term is identity-aligned with lanes in the slot-major layout.
    diff = dq - dq_nbr                                             # (3, N)
    r = w * diff                                                   # (3, N)

    energy_ref[...] += jnp.sum(r * diff)                           # == sum(w*|diff|^2)

    # Gradient wrt q: +r on source vertex (lane-aligned), -scatter onto neighbor.
    scat = lax.dot_general(r.astype(jnp.bfloat16), onehot_t,
                           (((1,), (1,)), ((), ())),
                           preferred_element_type=jnp.float32)     # (3, N)
    gq_scr[...] += r - scat

    # ---- Stage 3 (once): normalize + back-project gx = V (VT gq) --------------
    @pl.when(j == last)
    def _finalize():
        energy_ref[...] *= asap_weight / n
        gq = gq_scr[...] * (2.0 * asap_weight / n)                 # (3, N)
        t = jnp.zeros((1, n_comp), jnp.float32)
        for c in range(3):                                         # t = VT @ gq_flat
            t = t + lax.dot_general(
                gq[c:c + 1, :], vt_ref[c], (((1,), (1,)), ((), ())),
                preferred_element_type=jnp.float32)
        gx_rows = [jnp.dot(t, v_ref[c], preferred_element_type=jnp.float32)
                   for c in range(3)]                              # gx = V @ t
        gx_ref[...] = jnp.concatenate(gx_rows, axis=0)             # one full (3,N) store


def prepare_asap_constants(xyz1, neighbors, num_neighbors, weights,
                           eig_c, eig_v, eig_vt, n_comp):
    """One-time re-layout of everything constant across optimizer iterations."""
    n, k = neighbors.shape
    # Planar (coordinate-plane major) layouts: rows = x/y/z, vertices on lanes.
    p_pl = jnp.asarray(xyz1, jnp.float32).T                              # (3, N)
    c_pl = jnp.asarray(eig_c, jnp.float32).reshape(n, 3).T               # (3, N)
    # Per-plane bases: v3[c, m, i] = V[3i+c, m], vt3[c, m, i] = VT[m, 3i+c].
    v3 = (jnp.asarray(eig_v, jnp.float32)[:, :n_comp]
          .reshape(n, 3, n_comp).transpose(1, 2, 0))                     # (3, nComp, N)
    vt3 = (jnp.asarray(eig_vt, jnp.float32)[:n_comp, :]
           .reshape(n_comp, n, 3).transpose(2, 0, 1))                    # (3, nComp, N)
    # Slot-major, lane-dense edge data: [j, 0, i] = neighbor / masked weight.
    nbr_sl = jnp.asarray(neighbors, jnp.int32).T.reshape(k, 1, n)        # (K, 1, N)
    mask = (jnp.arange(k, dtype=jnp.int32)[None, :]
            < jnp.asarray(num_neighbors, jnp.int32)[:, None]).astype(jnp.float32)
    w_sl = (jnp.asarray(weights, jnp.float32) * mask).T.reshape(k, 1, n)  # (K, 1, N)
    return dict(n=n, k=k, n_comp=n_comp, c_pl=c_pl, p_pl=p_pl,
                v3=v3, vt3=vt3, nbr_sl=nbr_sl, w_sl=w_sl)


def asap_eigen_energy_input_domain(new_sample, consts, asap_weight):
    """Returns (asapEnergy scalar, grad wrt newSample of shape (N, 3))."""
    n, k, n_comp = consts["n"], consts["k"], consts["n_comp"]
    x_pl = jnp.asarray(new_sample, jnp.float32).T                        # per-call O(3N)

    basis_flops = 4 * 2 * 3 * n * n_comp                # 4 basis contractions
    edge_flops = k * 2 * (2 * 3 * n * n)                 # gather + scatter matmuls
    flops = basis_flops + edge_flops + k * 12 * n
    bytes_accessed = 4 * (3 * 3 * n + 2 * 3 * n_comp * n + 2 * k * n + 3 * n + 1)

    grid_spec = pltpu.PrefetchScalarGridSpec(
        num_scalar_prefetch=0,
        grid=(k,),
        in_specs=[
            pl.BlockSpec((3, n), lambda j: (0, 0)),                  # x (sample)
            pl.BlockSpec((3, n), lambda j: (0, 0)),                  # eig mean c
            pl.BlockSpec((3, n), lambda j: (0, 0)),                  # rest pose xyz1
            pl.BlockSpec((3, n_comp, n), lambda j: (0, 0, 0)),       # V
            pl.BlockSpec((3, n_comp, n), lambda j: (0, 0, 0)),       # VT
            pl.BlockSpec((1, 1, n), lambda j: (j, 0, 0)),            # nbr slot j
            pl.BlockSpec((1, 1, n), lambda j: (j, 0, 0)),            # masked w slot j
        ],
        out_specs=(
            pl.BlockSpec((1, 1), lambda j: (0, 0)),                  # energy (accum)
            pl.BlockSpec((3, n), lambda j: (0, 0)),                  # grad wrt x
        ),
        scratch_shapes=[pltpu.VMEM((3, n), jnp.float32),             # dq
                        pltpu.VMEM((3, n), jnp.float32)],            # gq accumulator
    )

    energy, gx_pl = pl.pallas_call(
        functools.partial(_asap_kernel, n=n, n_comp=n_comp,
                          asap_weight=float(asap_weight)),
        out_shape=(jax.ShapeDtypeStruct((1, 1), jnp.float32),
                   jax.ShapeDtypeStruct((3, n), jnp.float32)),
        grid_spec=grid_spec,
        compiler_params=pltpu.CompilerParams(
            dimension_semantics=("arbitrary",),   # slot axis is a reduction (gq/energy)
            vmem_limit_bytes=48 * 1024 * 1024),
        cost_estimate=pl.CostEstimate(flops=flops, transcendentals=0,
                                      bytes_accessed=bytes_accessed),
    )(x_pl, consts["c_pl"], consts["p_pl"], consts["v3"], consts["vt3"],
      consts["nbr_sl"], consts["w_sl"])

    return energy[0, 0], gx_pl.T


def _reference(new_sample, xyz1, neighbors, num_neighbors, weights,
               eig_c, eig_v, eig_vt, n_comp, asap_weight):
    """Pure-JAX reference (uses jax.grad) to validate the Pallas kernel."""
    n = xyz1.shape[0]
    k = neighbors.shape[1]

    def energy_fn(x):
        xf = x.reshape(-1)
        coeff = (xf - eig_c) @ eig_v[:, :n_comp]
        q = (eig_c + coeff @ eig_vt[:n_comp, :]).reshape(n, 3)
        d = (q[:, None, :] - q[neighbors]) - (xyz1[:, None, :] - xyz1[neighbors])
        mask = (jnp.arange(k)[None, :] < num_neighbors[:, None]).astype(jnp.float32)
        e_per_vertex = jnp.sum(weights * mask * jnp.sum(d * d, axis=-1), axis=1)
        return asap_weight * jnp.mean(e_per_vertex)

    return jax.value_and_grad(energy_fn)(new_sample)


if __name__ == "__main__":
    N, K, NCOMP = 64, 8, 16
    M = 3 * N
    key = jax.random.PRNGKey(0)
    k1, k2, k3, k4, k5, k6 = jax.random.split(key, 6)

    xyz1 = jax.random.normal(k1, (N, 3), jnp.float32)
    neighbors = jax.random.randint(k2, (N, K), 0, N, jnp.int32)
    num_neighbors = jax.random.randint(k3, (N,), 1, K + 1, jnp.int32)
    weights = jax.random.uniform(k4, (N, K), jnp.float32, minval=0.1, maxval=1.0)
    eig_c = xyz1.reshape(-1)                               # mean shape, flattened (3N,)
    eig_v, _ = jnp.linalg.qr(jax.random.normal(k5, (M, NCOMP), jnp.float32))
    eig_vt = eig_v.T
    asap_weight = 0.5
    new_sample = xyz1 + 0.1 * jax.random.normal(k6, (N, 3), jnp.float32)

    consts = prepare_asap_constants(xyz1, neighbors, num_neighbors, weights,
                                    eig_c, eig_v, eig_vt, NCOMP)
    energy, grad = asap_eigen_energy_input_domain(new_sample, consts, asap_weight)
    jax.block_until_ready((energy, grad))

    e_ref, g_ref = _reference(new_sample, xyz1, neighbors, num_neighbors,
                              weights, eig_c, eig_v, eig_vt, NCOMP, asap_weight)
    # bf16 MXU operands on the edge gather/scatter -> slightly looser tolerance.
    assert jnp.allclose(energy, e_ref, rtol=1e-2, atol=5e-4), (energy, e_ref)
    assert jnp.allclose(grad, g_ref, rtol=1e-2, atol=5e-4)

    print("KERNEL_OK")
</pallas_src>

<mosaic_0001>
module attributes {stable_mosaic.version = 11 : i64} {
  func.func @_asap_kernel(%arg0: i32, %arg1: memref<3x64xf32, #tpu.memory_space<vmem>>, %arg2: memref<3x64xf32, #tpu.memory_space<vmem>>, %arg3: memref<3x64xf32, #tpu.memory_space<vmem>>, %arg4: memref<3x16x64xf32, #tpu.memory_space<vmem>>, %arg5: memref<3x16x64xf32, #tpu.memory_space<vmem>>, %arg6: memref<1x1x64xi32, #tpu.memory_space<vmem>>, %arg7: memref<1x1x64xf32, #tpu.memory_space<vmem>>, %arg8: memref<1x1xf32, #tpu.memory_space<vmem>>, %arg9: memref<3x64xf32, #tpu.memory_space<vmem>>, %arg10: memref<3x64xf32, #tpu.memory_space<vmem>>, %arg11: memref<3x64xf32, #tpu.memory_space<vmem>>) attributes {dimension_semantics = [#tpu.dimension_semantics<arbitrary>], iteration_bounds = array<i64: 8>, scalar_prefetch = 0 : i64, scratch_operands = 2 : i64, tpu.core_type = #tpu.core_type<tc>, window_params = [{pipeline_mode = #tpu.pipeline_mode<synchronous>, transform_indices = @transform_0, window_bounds = array<i64: 3, 64>}, {pipeline_mode = #tpu.pipeline_mode<synchronous>, transform_indices = @transform_1, window_bounds = array<i64: 3, 64>}, {pipeline_mode = #tpu.pipeline_mode<synchronous>, transform_indices = @transform_2, window_bounds = array<i64: 3, 64>}, {pipeline_mode = #tpu.pipeline_mode<synchronous>, transform_indices = @transform_3, window_bounds = array<i64: 3, 16, 64>}, {pipeline_mode = #tpu.pipeline_mode<synchronous>, transform_indices = @transform_4, window_bounds = array<i64: 3, 16, 64>}, {transform_indices = @transform_5, window_bounds = array<i64: 1, 1, 64>}, {transform_indices = @transform_6, window_bounds = array<i64: 1, 1, 64>}, {pipeline_mode = #tpu.pipeline_mode<synchronous>, transform_indices = @transform_7, window_bounds = array<i64: 1, 1>}, {pipeline_mode = #tpu.pipeline_mode<synchronous>, transform_indices = @transform_8, window_bounds = array<i64: 3, 64>}]} {
    %c0_i32 = arith.constant 0 : i32
    %0 = arith.cmpi eq, %arg0, %c0_i32 : i32
    %1 = arith.extui %0 : i1 to i32
    %c0_i32_0 = arith.constant 0 : i32
    %2 = arith.cmpi ne, %1, %c0_i32_0 : i32
    scf.if %2 {
      %c0_19 = arith.constant 0 : index
      %c0_20 = arith.constant 0 : index
      %37 = vector.load %arg1[%c0_19, %c0_20] : memref<3x64xf32, #tpu.memory_space<vmem>>, vector<3x64xf32>
      %c0_21 = arith.constant 0 : index
      %c0_22 = arith.constant 0 : index
      %38 = vector.load %arg2[%c0_21, %c0_22] : memref<3x64xf32, #tpu.memory_space<vmem>>, vector<3x64xf32>
      %39 = arith.subf %37, %38 : vector<3x64xf32>
      %cst_23 = arith.constant 0.000000e+00 : f32
      %40 = vector.broadcast %cst_23 : f32 to vector<1x16xf32>
      %41 = vector.extract_strided_slice %39 {offsets = [0, 0], sizes = [1, 64], strides = [1, 1]} : vector<3x64xf32> to vector<1x64xf32>
      %c0_24 = arith.constant 0 : index
      %c0_25 = arith.constant 0 : index
      %c0_26 = arith.constant 0 : index
      %42 = vector.load %arg4[%c0_24, %c0_25, %c0_26] : memref<3x16x64xf32, #tpu.memory_space<vmem>>, vector<1x16x64xf32>
      %43 = vector.shape_cast %42 : vector<1x16x64xf32> to vector<16x64xf32>
      %cst_27 = arith.constant dense<0.000000e+00> : vector<1x16xf32>
      %44 = tpu.matmul %41, %43, %cst_27 {dimension_numbers = #tpu.dot_dimension_numbers<[1], [1], [0], [0], [0, 0, 1, 0], [], []>} : vector<1x64xf32>, vector<16x64xf32>, vector<1x16xf32> -> vector<1x16xf32>
      %45 = arith.addf %40, %44 : vector<1x16xf32>
      %46 = vector.extract_strided_slice %39 {offsets = [1, 0], sizes = [1, 64], strides = [1, 1]} : vector<3x64xf32> to vector<1x64xf32>
      %c1 = arith.constant 1 : index
      %c0_28 = arith.constant 0 : index
      %c0_29 = arith.constant 0 : index
      %47 = vector.load %arg4[%c1, %c0_28, %c0_29] : memref<3x16x64xf32, #tpu.memory_space<vmem>>, vector<1x16x64xf32>
      %48 = vector.shape_cast %47 : vector<1x16x64xf32> to vector<16x64xf32>
      %cst_30 = arith.constant dense<0.000000e+00> : vector<1x16xf32>
      %49 = tpu.matmul %46, %48, %cst_30 {dimension_numbers = #tpu.dot_dimension_numbers<[1], [1], [0], [0], [0, 0, 1, 0], [], []>} : vector<1x64xf32>, vector<16x64xf32>, vector<1x16xf32> -> vector<1x16xf32>
      %50 = arith.addf %45, %49 : vector<1x16xf32>
      %51 = vector.extract_strided_slice %39 {offsets = [2, 0], sizes = [1, 64], strides = [1, 1]} : vector<3x64xf32> to vector<1x64xf32>
      %c2 = arith.constant 2 : index
      %c0_31 = arith.constant 0 : index
      %c0_32 = arith.constant 0 : index
      %52 = vector.load %arg4[%c2, %c0_31, %c0_32] : memref<3x16x64xf32, #tpu.memory_space<vmem>>, vector<1x16x64xf32>
      %53 = vector.shape_cast %52 : vector<1x16x64xf32> to vector<16x64xf32>
      %cst_33 = arith.constant dense<0.000000e+00> : vector<1x16xf32>
      %54 = tpu.matmul %51, %53, %cst_33 {dimension_numbers = #tpu.dot_dimension_numbers<[1], [1], [0], [0], [0, 0, 1, 0], [], []>} : vector<1x64xf32>, vector<16x64xf32>, vector<1x16xf32> -> vector<1x16xf32>
      %55 = arith.addf %50, %54 : vector<1x16xf32>
      %c0_34 = arith.constant 0 : index
      %c0_35 = arith.constant 0 : index
      %56 = vector.load %arg2[%c0_34, %c0_35] : memref<3x64xf32, #tpu.memory_space<vmem>>, vector<1x64xf32>
      %c0_36 = arith.constant 0 : index
      %c0_37 = arith.constant 0 : index
      %57 = vector.load %arg3[%c0_36, %c0_37] : memref<3x64xf32, #tpu.memory_space<vmem>>, vector<1x64xf32>
      %58 = arith.subf %56, %57 : vector<1x64xf32>
      %c0_38 = arith.constant 0 : index
      %c0_39 = arith.constant 0 : index
      %c0_40 = arith.constant 0 : index
      %59 = vector.load %arg5[%c0_38, %c0_39, %c0_40] : memref<3x16x64xf32, #tpu.memory_space<vmem>>, vector<1x16x64xf32>
      %60 = vector.shape_cast %59 : vector<1x16x64xf32> to vector<16x64xf32>
      %cst_41 = arith.constant dense<0.000000e+00> : vector<1x64xf32>
      %61 = tpu.matmul %55, %60, %cst_41 {dimension_numbers = #tpu.dot_dimension_numbers<[1], [0], [0], [1], [0, 0, 1, 1], [], []>} : vector<1x16xf32>, vector<16x64xf32>, vector<1x64xf32> -> vector<1x64xf32>
      %62 = arith.addf %58, %61 : vector<1x64xf32>
      %c1_42 = arith.constant 1 : index
      %c0_43 = arith.constant 0 : index
      %63 = vector.load %arg2[%c1_42, %c0_43] : memref<3x64xf32, #tpu.memory_space<vmem>>, vector<1x64xf32>
      %c1_44 = arith.constant 1 : index
      %c0_45 = arith.constant 0 : index
      %64 = vector.load %arg3[%c1_44, %c0_45] : memref<3x64xf32, #tpu.memory_space<vmem>>, vector<1x64xf32>
      %65 = arith.subf %63, %64 : vector<1x64xf32>
      %c1_46 = arith.constant 1 : index
      %c0_47 = arith.constant 0 : index
      %c0_48 = arith.constant 0 : index
      %66 = vector.load %arg5[%c1_46, %c0_47, %c0_48] : memref<3x16x64xf32, #tpu.memory_space<vmem>>, vector<1x16x64xf32>
      %67 = vector.shape_cast %66 : vector<1x16x64xf32> to vector<16x64xf32>
      %cst_49 = arith.constant dense<0.000000e+00> : vector<1x64xf32>
      %68 = tpu.matmul %55, %67, %cst_49 {dimension_numbers = #tpu.dot_dimension_numbers<[1], [0], [0], [1], [0, 0, 1, 1], [], []>} : vector<1x16xf32>, vector<16x64xf32>, vector<1x64xf32> -> vector<1x64xf32>
      %69 = arith.addf %65, %68 : vector<1x64xf32>
      %c2_50 = arith.constant 2 : index
      %c0_51 = arith.constant 0 : index
      %70 = vector.load %arg2[%c2_50, %c0_51] : memref<3x64xf32, #tpu.memory_space<vmem>>, vector<1x64xf32>
      %c2_52 = arith.constant 2 : index
      %c0_53 = arith.constant 0 : index
      %71 = vector.load %arg3[%c2_52, %c0_53] : memref<3x64xf32, #tpu.memory_space<vmem>>, vector<1x64xf32>
      %72 = arith.subf %70, %71 : vector<1x64xf32>
      %c2_54 = arith.constant 2 : index
      %c0_55 = arith.constant 0 : index
      %c0_56 = arith.constant 0 : index
      %73 = vector.load %arg5[%c2_54, %c0_55, %c0_56] : memref<3x16x64xf32, #tpu.memory_space<vmem>>, vector<1x16x64xf32>
      %74 = vector.shape_cast %73 : vector<1x16x64xf32> to vector<16x64xf32>
      %cst_57 = arith.constant dense<0.000000e+00> : vector<1x64xf32>
      %75 = tpu.matmul %55, %74, %cst_57 {dimension_numbers = #tpu.dot_dimension_numbers<[1], [0], [0], [1], [0, 0, 1, 1], [], []>} : vector<1x16xf32>, vector<16x64xf32>, vector<1x64xf32> -> vector<1x64xf32>
      %76 = arith.addf %72, %75 : vector<1x64xf32>
      %77 = tpu.concatenate %62, %69, %76 in 0 : vector<1x64xf32>, vector<1x64xf32>, vector<1x64xf32> -> vector<3x64xf32>
      %c0_58 = arith.constant 0 : index
      %c0_59 = arith.constant 0 : index
      %78 = vector.load %arg10[%c0_58, %c0_59] : memref<3x64xf32, #tpu.memory_space<vmem>>, vector<3x64xf32>
      tpu.vector_store %arg10[%c0_58, %c0_59], %77 {strides = array<i32>} : memref<3x64xf32, #tpu.memory_space<vmem>>, vector<3x64xf32>,
      %cst_60 = arith.constant 0.000000e+00 : f32
      %79 = vector.broadcast %cst_60 : f32 to vector<3x64xf32>
      %c0_61 = arith.constant 0 : index
      %c0_62 = arith.constant 0 : index
      %80 = vector.load %arg11[%c0_61, %c0_62] : memref<3x64xf32, #tpu.memory_space<vmem>>, vector<3x64xf32>
      tpu.vector_store %arg11[%c0_61, %c0_62], %79 {strides = array<i32>} : memref<3x64xf32, #tpu.memory_space<vmem>>, vector<3x64xf32>,
      %cst_63 = arith.constant 0.000000e+00 : f32
      %81 = vector.broadcast %cst_63 : f32 to vector<1x1xf32>
      %c0_64 = arith.constant 0 : index
      %c0_65 = arith.constant 0 : index
      %82 = vector.load %arg8[%c0_64, %c0_65] : memref<1x1xf32, #tpu.memory_space<vmem>>, vector<1x1xf32>
      tpu.vector_store %arg8[%c0_64, %c0_65], %81 {strides = array<i32>} : memref<1x1xf32, #tpu.memory_space<vmem>>, vector<1x1xf32>,
    } else {
    }
    %c0 = arith.constant 0 : index
    %c0_1 = arith.constant 0 : index
    %3 = vector.load %arg10[%c0, %c0_1] : memref<3x64xf32, #tpu.memory_space<vmem>>, vector<3x64xf32>
    %c0_2 = arith.constant 0 : index
    %c0_3 = arith.constant 0 : index
    %c0_4 = arith.constant 0 : index
    %4 = vector.load %arg6[%c0_2, %c0_3, %c0_4] : memref<1x1x64xi32, #tpu.memory_space<vmem>>, vector<1x1x64xi32>
    %5 = vector.shape_cast %4 : vector<1x1x64xi32> to vector<1x64xi32>
    %c0_5 = arith.constant 0 : index
    %c0_6 = arith.constant 0 : index
    %c0_7 = arith.constant 0 : index
    %6 = vector.load %arg7[%c0_5, %c0_6, %c0_7] : memref<1x1x64xf32, #tpu.memory_space<vmem>>, vector<1x1x64xf32>
    %7 = vector.shape_cast %6 : vector<1x1x64xf32> to vector<1x64xf32>
    %8 = tpu.iota {dimensions = array<i32: 0>} : vector<64x64xi32>
    %9 = vector.broadcast %5 : vector<1x64xi32> to vector<64x64xi32>
    %10 = arith.cmpi eq, %8, %9 : vector<64x64xi32>
    %11 = arith.extui %10 : vector<64x64xi1> to vector<64x64xi32>
    %12 = arith.sitofp %11 : vector<64x64xi32> to vector<64x64xf32>
    %13 = arith.truncf %12 : vector<64x64xf32> to vector<64x64xbf16>
    %14 = arith.truncf %3 : vector<3x64xf32> to vector<3x64xbf16>
    %cst = arith.constant dense<0.000000e+00> : vector<3x64xf32>
    %15 = tpu.matmul %14, %13, %cst {dimension_numbers = #tpu.dot_dimension_numbers<[1], [0], [0], [1], [0, 0, 1, 1], [], []>} : vector<3x64xbf16>, vector<64x64xbf16>, vector<3x64xf32> -> vector<3x64xf32>
    %16 = arith.subf %3, %15 : vector<3x64xf32>
    %17 = vector.broadcast %7 : vector<1x64xf32> to vector<3x64xf32>
    %18 = arith.mulf %17, %16 : vector<3x64xf32>
    %c0_8 = arith.constant 0 : index
    %c0_9 = arith.constant 0 : index
    %19 = vector.load %arg8[%c0_8, %c0_9] : memref<1x1xf32, #tpu.memory_space<vmem>>, vector<1x1xf32>
    %20 = arith.mulf %18, %16 : vector<3x64xf32>
    %21 = vector.shape_cast %20 : vector<3x64xf32> to vector<1x3x64xf32>
    %cst_10 = arith.constant dense<0.000000e+00> : vector<1xf32>
    %22 = vector.multi_reduction <add>, %21, %cst_10 [1, 2] : vector<1x3x64xf32> to vector<1xf32>
    %23 = vector.shape_cast %22 : vector<1xf32> to vector<1x1x1xf32>
    %24 = vector.extract %23[0, 0, 0] : f32 from vector<1x1x1xf32>
    %25 = vector.broadcast %24 : f32 to vector<1x1xf32>
    %26 = arith.addf %19, %25 : vector<1x1xf32>
    %c0_11 = arith.constant 0 : index
    %c0_12 = arith.constant 0 : index
    %27 = vector.load %arg8[%c0_11, %c0_12] : memref<1x1xf32, #tpu.memory_space<vmem>>, vector<1x1xf32>
    tpu.vector_store %arg8[%c0_11, %c0_12], %26 {strides = array<i32>} : memref<1x1xf32, #tpu.memory_space<vmem>>, vector<1x1xf32>,
    %28 = arith.truncf %18 : vector<3x64xf32> to vector<3x64xbf16>
    %cst_13 = arith.constant dense<0.000000e+00> : vector<3x64xf32>
    %29 = tpu.matmul %28, %13, %cst_13 {dimension_numbers = #tpu.dot_dimension_numbers<[1], [1], [0], [0], [0, 0, 1, 0], [], []>} : vector<3x64xbf16>, vector<64x64xbf16>, vector<3x64xf32> -> vector<3x64xf32>
    %c0_14 = arith.constant 0 : index
    %c0_15 = arith.constant 0 : index
    %30 = vector.load %arg11[%c0_14, %c0_15] : memref<3x64xf32, #tpu.memory_space<vmem>>, vector<3x64xf32>
    %31 = arith.subf %18, %29 : vector<3x64xf32>
    %32 = arith.addf %30, %31 : vector<3x64xf32>
    %c0_16 = arith.constant 0 : index
    %c0_17 = arith.constant 0 : index
    %33 = vector.load %arg11[%c0_16, %c0_17] : memref<3x64xf32, #tpu.memory_space<vmem>>, vector<3x64xf32>
    tpu.vector_store %arg11[%c0_16, %c0_17], %32 {strides = array<i32>} : memref<3x64xf32, #tpu.memory_space<vmem>>, vector<3x64xf32>,
    %c7_i32 = arith.constant 7 : i32
    %34 = arith.cmpi eq, %arg0, %c7_i32 : i32
    %35 = arith.extui %34 : i1 to i32
    %c0_i32_18 = arith.constant 0 : i32
    %36 = arith.cmpi ne, %35, %c0_i32_18 : i32
    scf.if %36 {
      %c0_19 = arith.constant 0 : index
      %c0_20 = arith.constant 0 : index
      %37 = vector.load %arg8[%c0_19, %c0_20] : memref<1x1xf32, #tpu.memory_space<vmem>>, vector<1x1xf32>
      %cst_21 = arith.constant 7.812500e-03 : f32
      %38 = vector.broadcast %cst_21 : f32 to vector<1x1xf32>
      %39 = arith.mulf %37, %38 : vector<1x1xf32>
      %c0_22 = arith.constant 0 : index
      %c0_23 = arith.constant 0 : index
      %40 = vector.load %arg8[%c0_22, %c0_23] : memref<1x1xf32, #tpu.memory_space<vmem>>, vector<1x1xf32>
      tpu.vector_store %arg8[%c0_22, %c0_23], %39 {strides = array<i32>} : memref<1x1xf32, #tpu.memory_space<vmem>>, vector<1x1xf32>,
      %c0_24 = arith.constant 0 : index
      %c0_25 = arith.constant 0 : index
      %41 = vector.load %arg11[%c0_24, %c0_25] : memref<3x64xf32, #tpu.memory_space<vmem>>, vector<3x64xf32>
      %cst_26 = arith.constant 1.562500e-02 : f32
      %42 = vector.broadcast %cst_26 : f32 to vector<3x64xf32>
      %43 = arith.mulf %41, %42 : vector<3x64xf32>
      %cst_27 = arith.constant 0.000000e+00 : f32
      %44 = vector.broadcast %cst_27 : f32 to vector<1x16xf32>
      %45 = vector.extract_strided_slice %43 {offsets = [0, 0], sizes = [1, 64], strides = [1, 1]} : vector<3x64xf32> to vector<1x64xf32>
      %c0_28 = arith.constant 0 : index
      %c0_29 = arith.constant 0 : index
      %c0_30 = arith.constant 0 : index
      %46 = vector.load %arg5[%c0_28, %c0_29, %c0_30] : memref<3x16x64xf32, #tpu.memory_space<vmem>>, vector<1x16x64xf32>
      %47 = vector.shape_cast %46 : vector<1x16x64xf32> to vector<16x64xf32>
      %cst_31 = arith.constant dense<0.000000e+00> : vector<1x16xf32>
      %48 = tpu.matmul %45, %47, %cst_31 {dimension_numbers = #tpu.dot_dimension_numbers<[1], [1], [0], [0], [0, 0, 1, 0], [], []>} : vector<1x64xf32>, vector<16x64xf32>, vector<1x16xf32> -> vector<1x16xf32>
      %49 = arith.addf %44, %48 : vector<1x16xf32>
      %50 = vector.extract_strided_slice %43 {offsets = [1, 0], sizes = [1, 64], strides = [1, 1]} : vector<3x64xf32> to vector<1x64xf32>
      %c1 = arith.constant 1 : index
      %c0_32 = arith.constant 0 : index
      %c0_33 = arith.constant 0 : index
      %51 = vector.load %arg5[%c1, %c0_32, %c0_33] : memref<3x16x64xf32, #tpu.memory_space<vmem>>, vector<1x16x64xf32>
      %52 = vector.shape_cast %51 : vector<1x16x64xf32> to vector<16x64xf32>
      %cst_34 = arith.constant dense<0.000000e+00> : vector<1x16xf32>
      %53 = tpu.matmul %50, %52, %cst_34 {dimension_numbers = #tpu.dot_dimension_numbers<[1], [1], [0], [0], [0, 0, 1, 0], [], []>} : vector<1x64xf32>, vector<16x64xf32>, vector<1x16xf32> -> vector<1x16xf32>
      %54 = arith.addf %49, %53 : vector<1x16xf32>
      %55 = vector.extract_strided_slice %43 {offsets = [2, 0], sizes = [1, 64], strides = [1, 1]} : vector<3x64xf32> to vector<1x64xf32>
      %c2 = arith.constant 2 : index
      %c0_35 = arith.constant 0 : index
      %c0_36 = arith.constant 0 : index
      %56 = vector.load %arg5[%c2, %c0_35, %c0_36] : memref<3x16x64xf32, #tpu.memory_space<vmem>>, vector<1x16x64xf32>
      %57 = vector.shape_cast %56 : vector<1x16x64xf32> to vector<16x64xf32>
      %cst_37 = arith.constant dense<0.000000e+00> : vector<1x16xf32>
      %58 = tpu.matmul %55, %57, %cst_37 {dimension_numbers = #tpu.dot_dimension_numbers<[1], [1], [0], [0], [0, 0, 1, 0], [], []>} : vector<1x64xf32>, vector<16x64xf32>, vector<1x16xf32> -> vector<1x16xf32>
      %59 = arith.addf %54, %58 : vector<1x16xf32>
      %c0_38 = arith.constant 0 : index
      %c0_39 = arith.constant 0 : index
      %c0_40 = arith.constant 0 : index
      %60 = vector.load %arg4[%c0_38, %c0_39, %c0_40] : memref<3x16x64xf32, #tpu.memory_space<vmem>>, vector<1x16x64xf32>
      %61 = vector.shape_cast %60 : vector<1x16x64xf32> to vector<16x64xf32>
      %cst_41 = arith.constant dense<0.000000e+00> : vector<1x64xf32>
      %62 = tpu.matmul %59, %61, %cst_41 {dimension_numbers = #tpu.dot_dimension_numbers<[1], [0], [0], [1], [0, 0, 1, 1], [], []>} : vector<1x16xf32>, vector<16x64xf32>, vector<1x64xf32> -> vector<1x64xf32>
      %c1_42 = arith.constant 1 : index
      %c0_43 = arith.constant 0 : index
      %c0_44 = arith.constant 0 : index
      %63 = vector.load %arg4[%c1_42, %c0_43, %c0_44] : memref<3x16x64xf32, #tpu.memory_space<vmem>>, vector<1x16x64xf32>
      %64 = vector.shape_cast %63 : vector<1x16x64xf32> to vector<16x64xf32>
      %cst_45 = arith.constant dense<0.000000e+00> : vector<1x64xf32>
      %65 = tpu.matmul %59, %64, %cst_45 {dimension_numbers = #tpu.dot_dimension_numbers<[1], [0], [0], [1], [0, 0, 1, 1], [], []>} : vector<1x16xf32>, vector<16x64xf32>, vector<1x64xf32> -> vector<1x64xf32>
      %c2_46 = arith.constant 2 : index
      %c0_47 = arith.constant 0 : index
      %c0_48 = arith.constant 0 : index
      %66 = vector.load %arg4[%c2_46, %c0_47, %c0_48] : memref<3x16x64xf32, #tpu.memory_space<vmem>>, vector<1x16x64xf32>
      %67 = vector.shape_cast %66 : vector<1x16x64xf32> to vector<16x64xf32>
      %cst_49 = arith.constant dense<0.000000e+00> : vector<1x64xf32>
      %68 = tpu.matmul %59, %67, %cst_49 {dimension_numbers = #tpu.dot_dimension_numbers<[1], [0], [0], [1], [0, 0, 1, 1], [], []>} : vector<1x16xf32>, vector<16x64xf32>, vector<1x64xf32> -> vector<1x64xf32>
      %69 = tpu.concatenate %62, %65, %68 in 0 : vector<1x64xf32>, vector<1x64xf32>, vector<1x64xf32> -> vector<3x64xf32>
      %c0_50 = arith.constant 0 : index
      %c0_51 = arith.constant 0 : index
      %70 = vector.load %arg9[%c0_50, %c0_51] : memref<3x64xf32, #tpu.memory_space<vmem>>, vector<3x64xf32>
      tpu.vector_store %arg9[%c0_50, %c0_51], %69 {strides = array<i32>} : memref<3x64xf32, #tpu.memory_space<vmem>>, vector<3x64xf32>,
    } else {
    }
    return
  }
  func.func @transform_0(%arg0: i32) -> (i32, i32) {
    %c0_i32 = arith.constant 0 : i32
    %c0_i32_0 = arith.constant 0 : i32
    %c0_i32_1 = arith.constant 0 : i32
    return %c0_i32, %c0_i32_0 : i32, i32
  }
  func.func @transform_1(%arg0: i32) -> (i32, i32) {
    %c0_i32 = arith.constant 0 : i32
    %c0_i32_0 = arith.constant 0 : i32
    %c0_i32_1 = arith.constant 0 : i32
    return %c0_i32, %c0_i32_0 : i32, i32
  }
  func.func @transform_2(%arg0: i32) -> (i32, i32) {
    %c0_i32 = arith.constant 0 : i32
    %c0_i32_0 = arith.constant 0 : i32
    %c0_i32_1 = arith.constant 0 : i32
    return %c0_i32, %c0_i32_0 : i32, i32
  }
  func.func @transform_3(%arg0: i32) -> (i32, i32, i32) {
    %c0_i32 = arith.constant 0 : i32
    %c0_i32_0 = arith.constant 0 : i32
    %c0_i32_1 = arith.constant 0 : i32
    %c0_i32_2 = arith.constant 0 : i32
    return %c0_i32, %c0_i32_0, %c0_i32_1 : i32, i32, i32
  }
  func.func @transform_4(%arg0: i32) -> (i32, i32, i32) {
    %c0_i32 = arith.constant 0 : i32
    %c0_i32_0 = arith.constant 0 : i32
    %c0_i32_1 = arith.constant 0 : i32
    %c0_i32_2 = arith.constant 0 : i32
    return %c0_i32, %c0_i32_0, %c0_i32_1 : i32, i32, i32
  }
  func.func @transform_5(%arg0: i32) -> (i32, i32, i32) {
    %c0_i32 = arith.constant 0 : i32
    %c0_i32_0 = arith.constant 0 : i32
    %c0_i32_1 = arith.constant 0 : i32
    return %arg0, %c0_i32, %c0_i32_0 : i32, i32, i32
  }
  func.func @transform_6(%arg0: i32) -> (i32, i32, i32) {
    %c0_i32 = arith.constant 0 : i32
    %c0_i32_0 = arith.constant 0 : i32
    %c0_i32_1 = arith.constant 0 : i32
    return %arg0, %c0_i32, %c0_i32_0 : i32, i32, i32
  }
  func.func @transform_7(%arg0: i32) -> (i32, i32) {
    %c0_i32 = arith.constant 0 : i32
    %c0_i32_0 = arith.constant 0 : i32
    %c0_i32_1 = arith.constant 0 : i32
    return %c0_i32, %c0_i32_0 : i32, i32
  }
  func.func @transform_8(%arg0: i32) -> (i32, i32) {
    %c0_i32 = arith.constant 0 : i32
    %c0_i32_0 = arith.constant 0 : i32
    %c0_i32_1 = arith.constant 0 : i32
    return %c0_i32, %c0_i32_0 : i32, i32
  }
}

</mosaic_0001>

<llo_original>
// kernel: tpu_custom_call.1
$region0: #{tpu_custom_call.1}
  #allocation0 [shape = 'u32[]', space=smem, size = 0x4, offset = 0x4, fixed_abs, tag = 'smem constant byte address 0x4 - core index']
  #allocation1 [shape = 'u32[144,128]{1,0:T(1,128)}', space=vmem, size = 0x12000, scoped, tag = 'internal scratch']
  #allocation2 [shape = 'f32[3,64]{1,0:T(4,128)}', space=vmem, size = 0x800, scoped, tag = 'scratch operand']
  #allocation3 [shape = 'f32[3,64]{1,0:T(4,128)}', space=vmem, size = 0x800, scoped, tag = 'scratch operand']
  %s0 = inlined_call_operand.hbm [shape: f32[3,64], index: 0, kind: input, shape index: {}]
  %s1 = inlined_call_operand.hbm [shape: f32[3,64], index: 1, kind: input, shape index: {}]
  %s2 = inlined_call_operand.hbm [shape: f32[3,64], index: 2, kind: input, shape index: {}]
  %s3 = inlined_call_operand.hbm [shape: f32[3,16,64], index: 3, kind: input, shape index: {}]
  %s4 = inlined_call_operand.hbm [shape: f32[3,16,64], index: 4, kind: input, shape index: {}]
  %s5 = inlined_call_operand.vmem [shape: s32[8,1,64], index: 5, kind: input, shape index: {}]
  %s6 = inlined_call_operand.vmem [shape: f32[8,1,64], index: 6, kind: input, shape index: {}]
  %s7 = inlined_call_operand.hbm [shape: f32[1,1], index: 7, kind: output, shape index: {0}]
  %s8 = inlined_call_operand.hbm [shape: f32[3,64], index: 8, kind: output, shape index: {1}]
  %9 = xla_tuple %s7, %s8
  %s10 = sld [smem:[#allocation0]]
  $region97: #{tpu_custom_call.1} parent=0
    _
  %s12 = ssub.s32 1, %s10
  %s13 = scalar_select 0, %s12, %s10
  $region1: #{tpu_custom_call.1} parent=0
    #allocation4 [shape = 'u8[2048]{0}', space=vmem, size = 0x800, scoped, tag = 'input window, operand 0, single buffered']
    #allocation5 [shape = 's32[2]{0}', space=sflag, size = 0x8, scoped, tag = 'scoped memory for tpu_custom_call.1']
    #allocation6 [shape = 's32[2]{0}', space=sflag, size = 0x8, scoped, tag = 'scoped memory for tpu_custom_call.1']
    #allocation7 [shape = 'u8[2048]{0}', space=vmem, size = 0x800, scoped, tag = 'input window, operand 1, single buffered']
    #allocation8 [shape = 's32[1]{0}', space=sflag, size = 0x4, scoped, tag = 'scoped memory for tpu_custom_call.1']
    #allocation9 [shape = 'u8[2048]{0}', space=vmem, size = 0x800, scoped, tag = 'input window, operand 2, single buffered']
    #allocation10 [shape = 'u8[24576]{0}', space=vmem, size = 0x6000, scoped, tag = 'input window, operand 3, single buffered']
    #allocation11 [shape = 's32[1]{0}', space=sflag, size = 0x4, scoped, tag = 'scoped memory for tpu_custom_call.1']
    #allocation12 [shape = 'u8[24576]{0}', space=vmem, size = 0x6000, scoped, tag = 'input window, operand 4, single buffered']
    #allocation13 [shape = 'u8[512]{0}', space=vmem, size = 0x400, scoped, tag = 'output window, operand 0, single buffered']
    #allocation14 [shape = 'u8[2048]{0}', space=vmem, size = 0x800, scoped, tag = 'output window, operand 1, single buffered']
    #allocation15 [shape = 's32[1]{0}', space=sflag, size = 0x4, scoped, tag = 'scoped memory for tpu_custom_call.1']
    %14 = vsyncpa [#allocation5], 0
    %15 = vsyncpa [#allocation8], 0
    %16 = vsyncpa [#allocation11], 0
    %17 = vsyncpa [#allocation6], 0
    %18 = vsyncpa [#allocation15], 0
    loop: start=0, step=1, limit=10
    $region2: #{tpu_custom_call.1} parent=1 // loop_pre_header
      _
    $region3: #{tpu_custom_call.1} parent=1 // loop_header
      %s20 = sphi 0, %s24
      %p21 = scmp.ge.s32.totalorder %s20, 10
      %s28 = sphi 0, %s28
      %s30 = sphi 0, %s28
      %s31 = sphi 0, %s30
      %s45 = sphi 0, %s31
      %s49 = sphi 0, %s49
      %s51 = sphi 0, %s49
      %s52 = sphi 0, %s51
      %s66 = sphi 0, %s52
      %s70 = sphi 0, %s70
      %s72 = sphi 0, %s70
      %s73 = sphi 0, %s72
      %s87 = sphi 0, %s73
      %s91 = sphi 0, %s91
      %s93 = sphi 0, %s91
      %s94 = sphi 0, %s93
      %s108 = sphi 0, %s94
      %s112 = sphi 0, %s112
      %s114 = sphi 0, %s112
      %s115 = sphi 0, %s114
      %s129 = sphi 0, %s115
      %s135 = sphi 0, %s137
      %s138 = sphi 0, %s135
      %s139 = sphi 0, %s138
      %s155 = sphi 0, %s139
      %s161 = sphi 0, %s163
      %s164 = sphi 0, %s161
      %s165 = sphi 0, %s164
      %s181 = sphi 0, %s165
      %s185 = sphi 0, %s185
      %s187 = sphi 0, %s185
      %s188 = sphi 0, %s187
      %s202 = sphi 0, %s188
      %s206 = sphi 0, %s206
      %s208 = sphi 0, %s206
      %s209 = sphi 0, %s208
      %s223 = sphi 0, %s209
    $region4: #{tpu_custom_call.1} parent=1 // loop_header_branch
      %23 = sbr.rel (%p21) target = $region8
    $region5: #{tpu_custom_call.1} parent=1 // loop_body
      %s25 = ssub.s32 %s20, 1
      %s26 = ssub.s32 %s20, 2
      %s27 = sadd.s32 %s20, 1
      %s29 = sadd.s32 %s28, 1
      %p32 = scmp.eq.s32.totalorder %s20, 7
      %p33 = scmp.ne.s32.totalorder %s28, %s30
      %p34 = scmp.eq.s32.totalorder %s20, 0
      %p35 = por %p33, %p34
      %p36 = scmp.ne.s32.totalorder %s28, %s30
      %p37 = scmp.eq.s32.totalorder %s25, 7
      %p38 = por %p36, %p37
      %p39 = scmp.ne.s32.totalorder %s30, %s31
      %p40 = scmp.eq.s32.totalorder %s25, 0
      %p41 = por %p39, %p40
      %p42 = scmp.ne.s32.totalorder %s30, %s31
      %p43 = scmp.eq.s32.totalorder %s26, 7
      %p44 = por %p42, %p43
      %p46 = scmp.ne.s32.totalorder %s31, %s45
      %p47 = scmp.eq.s32.totalorder %s26, 0
      %p48 = por %p46, %p47
      %s50 = sadd.s32 %s49, 1
      %p53 = scmp.eq.s32.totalorder %s20, 7
      %p54 = scmp.ne.s32.totalorder %s49, %s51
      %p55 = scmp.eq.s32.totalorder %s20, 0
      %p56 = por %p54, %p55
      %p57 = scmp.ne.s32.totalorder %s49, %s51
      %p58 = scmp.eq.s32.totalorder %s25, 7
      %p59 = por %p57, %p58
      %p60 = scmp.ne.s32.totalorder %s51, %s52
      %p61 = scmp.eq.s32.totalorder %s25, 0
      %p62 = por %p60, %p61
      %p63 = scmp.ne.s32.totalorder %s51, %s52
      %p64 = scmp.eq.s32.totalorder %s26, 7
      %p65 = por %p63, %p64
      %p67 = scmp.ne.s32.totalorder %s52, %s66
      %p68 = scmp.eq.s32.totalorder %s26, 0
      %p69 = por %p67, %p68
      %s71 = sadd.s32 %s70, 1
      %p74 = scmp.eq.s32.totalorder %s20, 7
      %p75 = scmp.ne.s32.totalorder %s70, %s72
      %p76 = scmp.eq.s32.totalorder %s20, 0
      %p77 = por %p75, %p76
      %p78 = scmp.ne.s32.totalorder %s70, %s72
      %p79 = scmp.eq.s32.totalorder %s25, 7
      %p80 = por %p78, %p79
      %p81 = scmp.ne.s32.totalorder %s72, %s73
      %p82 = scmp.eq.s32.totalorder %s25, 0
      %p83 = por %p81, %p82
      %p84 = scmp.ne.s32.totalorder %s72, %s73
      %p85 = scmp.eq.s32.totalorder %s26, 7
      %p86 = por %p84, %p85
      %p88 = scmp.ne.s32.totalorder %s73, %s87
      %p89 = scmp.eq.s32.totalorder %s26, 0
      %p90 = por %p88, %p89
      %s92 = sadd.s32 %s91, 1
      %p95 = scmp.eq.s32.totalorder %s20, 7
      %p96 = scmp.ne.s32.totalorder %s91, %s93
      %p97 = scmp.eq.s32.totalorder %s20, 0
      %p98 = por %p96, %p97
      %p99 = scmp.ne.s32.totalorder %s91, %s93
      %p100 = scmp.eq.s32.totalorder %s25, 7
      %p101 = por %p99, %p100
      %p102 = scmp.ne.s32.totalorder %s93, %s94
      %p103 = scmp.eq.s32.totalorder %s25, 0
      %p104 = por %p102, %p103
      %p105 = scmp.ne.s32.totalorder %s93, %s94
      %p106 = scmp.eq.s32.totalorder %s26, 7
      %p107 = por %p105, %p106
      %p109 = scmp.ne.s32.totalorder %s94, %s108
      %p110 = scmp.eq.s32.totalorder %s26, 0
      %p111 = por %p109, %p110
      %s113 = sadd.s32 %s112, 1
      %p116 = scmp.eq.s32.totalorder %s20, 7
      %p117 = scmp.ne.s32.totalorder %s112, %s114
      %p118 = scmp.eq.s32.totalorder %s20, 0
      %p119 = por %p117, %p118
      %p120 = scmp.ne.s32.totalorder %s112, %s114
      %p121 = scmp.eq.s32.totalorder %s25, 7
      %p122 = por %p120, %p121
      %p123 = scmp.ne.s32.totalorder %s114, %s115
      %p124 = scmp.eq.s32.totalorder %s25, 0
      %p125 = por %p123, %p124
      %p126 = scmp.ne.s32.totalorder %s114, %s115
      %p127 = scmp.eq.s32.totalorder %s26, 7
      %p128 = por %p126, %p127
      %p130 = scmp.ne.s32.totalorder %s115, %s129
      %p131 = scmp.eq.s32.totalorder %s26, 0
      %p132 = por %p130, %p131
      %s133 = ssub.s32 %s20, %s27
      %p134 = scmp.eq.s32.totalorder %s133, 0
      %s136 = sadd.s32 %s135, 1
      %s137 = scalar_select %p134, %s135, %s136
      %p140 = pneg %p134
      %p141 = scmp.eq.s32.totalorder %s20, 7
      %p142 = por %p140, %p141
      %p143 = scmp.ne.s32.totalorder %s135, %s138
      %p144 = scmp.eq.s32.totalorder %s20, 0
      %p145 = por %p143, %p144
      %p146 = scmp.ne.s32.totalorder %s135, %s138
      %p147 = scmp.eq.s32.totalorder %s25, 7
      %p148 = por %p146, %p147
      %p149 = scmp.ne.s32.totalorder %s138, %s139
      %p150 = scmp.eq.s32.totalorder %s25, 0
      %p151 = por %p149, %p150
      %p152 = scmp.ne.s32.totalorder %s138, %s139
      %p153 = scmp.eq.s32.totalorder %s26, 7
      %p154 = por %p152, %p153
      %p156 = scmp.ne.s32.totalorder %s139, %s155
      %p157 = scmp.eq.s32.totalorder %s26, 0
      %p158 = por %p156, %p157
      %s159 = ssub.s32 %s20, %s27
      %p160 = scmp.eq.s32.totalorder %s159, 0
      %s162 = sadd.s32 %s161, 1
      %s163 = scalar_select %p160, %s161, %s162
      %p166 = pneg %p160
      %p167 = scmp.eq.s32.totalorder %s20, 7
      %p168 = por %p166, %p167
      %p169 = scmp.ne.s32.totalorder %s161, %s164
      %p170 = scmp.eq.s32.totalorder %s20, 0
      %p171 = por %p169, %p170
      %p172 = scmp.ne.s32.totalorder %s161, %s164
      %p173 = scmp.eq.s32.totalorder %s25, 7
      %p174 = por %p172, %p173
      %p175 = scmp.ne.s32.totalorder %s164, %s165
      %p176 = scmp.eq.s32.totalorder %s25, 0
      %p177 = por %p175, %p176
      %p178 = scmp.ne.s32.totalorder %s164, %s165
      %p179 = scmp.eq.s32.totalorder %s26, 7
      %p180 = por %p178, %p179
      %p182 = scmp.ne.s32.totalorder %s165, %s181
      %p183 = scmp.eq.s32.totalorder %s26, 0
      %p184 = por %p182, %p183
      %s186 = sadd.s32 %s185, 1
      %p189 = scmp.eq.s32.totalorder %s20, 7
      %p190 = scmp.ne.s32.totalorder %s185, %s187
      %p191 = scmp.eq.s32.totalorder %s20, 0
      %p192 = por %p190, %p191
      %p193 = scmp.ne.s32.totalorder %s185, %s187
      %p194 = scmp.eq.s32.totalorder %s25, 7
      %p195 = por %p193, %p194
      %p196 = scmp.ne.s32.totalorder %s187, %s188
      %p197 = scmp.eq.s32.totalorder %s25, 0
      %p198 = por %p196, %p197
      %p199 = scmp.ne.s32.totalorder %s187, %s188
      %p200 = scmp.eq.s32.totalorder %s26, 7
      %p201 = por %p199, %p200
      %p203 = scmp.ne.s32.totalorder %s188, %s202
      %p204 = scmp.eq.s32.totalorder %s26, 0
      %p205 = por %p203, %p204
      %s207 = sadd.s32 %s206, 1
      %p210 = scmp.eq.s32.totalorder %s20, 7
      %p211 = scmp.ne.s32.totalorder %s206, %s208
      %p212 = scmp.eq.s32.totalorder %s20, 0
      %p213 = por %p211, %p212
      %p214 = scmp.ne.s32.totalorder %s206, %s208
      %p215 = scmp.eq.s32.totalorder %s25, 7
      %p216 = por %p214, %p215
      %p217 = scmp.ne.s32.totalorder %s208, %s209
      %p218 = scmp.eq.s32.totalorder %s25, 0
      %p219 = por %p217, %p218
      %p220 = scmp.ne.s32.totalorder %s208, %s209
      %p221 = scmp.eq.s32.totalorder %s26, 7
      %p222 = por %p220, %p221
      %p224 = scmp.ne.s32.totalorder %s209, %s223
      %p225 = scmp.eq.s32.totalorder %s26, 0
      %p226 = por %p224, %p225
      %p227 = scmp.le.s32.totalorder 1, %s20
      %p228 = scmp.lt.s32.totalorder %s20, 9
      %p229 = pnand %p227, %p228
      %p230 = pneg %p229
      // Predicated region
      $region9: #{tpu_custom_call.1} parent=5 // pred_check
        _
      $region10: #{tpu_custom_call.1} parent=5 // pred_check_branch
        %232 = sbr.rel (%p229) target = $region12
      $region11: #{tpu_custom_call.1} parent=5 // pred_region
        %s233 = ssub.s32 %s20, 1
        // Predicated region
        $region13: #{tpu_custom_call.1} parent=11 // pred_check
          %p234 = pneg %p41
        $region14: #{tpu_custom_call.1} parent=11 // pred_check_branch
          %236 = sbr.rel (%p234) target = $region16
        $region15: #{tpu_custom_call.1} parent=11 // pred_region
          %s238 = ssub.s32 64, 64
          %239 = vsyncadd [#allocation5], %s238
          %s241 = sshll.u32 [#allocation4], 4
          %s242 = int_to_ptr.vmem [resolvable:$true] %s241
          %244 = dma.hbm_to_vmem [thread:$0]  %s0, 64, %s242, [#allocation5]
        $region16: #{tpu_custom_call.1} parent=11 // pred_fallthru
          _
        // Predicated region
        $region17: #{tpu_custom_call.1} parent=11 // pred_check
          %p245 = pneg %p62
        $region18: #{tpu_custom_call.1} parent=11 // pred_check_branch
          %247 = sbr.rel (%p245) target = $region20
        $region19: #{tpu_custom_call.1} parent=11 // pred_region
          %s249 = ssub.s32 64, 64
          %250 = vsyncadd [#allocation8], %s249
          %s252 = sshll.u32 [#allocation7], 4
          %s253 = int_to_ptr.vmem [resolvable:$true] %s252
          %255 = dma.hbm_to_vmem [thread:$0]  %s1, 64, %s253, [#allocation8]
        $region20: #{tpu_custom_call.1} parent=11 // pred_fallthru
          _
        // Predicated region
        $region21: #{tpu_custom_call.1} parent=11 // pred_check
          %p256 = pneg %p83
        $region22: #{tpu_custom_call.1} parent=11 // pred_check_branch
          %258 = sbr.rel (%p256) target = $region24
        $region23: #{tpu_custom_call.1} parent=11 // pred_region
          %s260 = ssub.s32 64, 64
          %261 = vsyncadd [#allocation8], %s260
          %s263 = sshll.u32 [#allocation9], 4
          %s264 = int_to_ptr.vmem [resolvable:$true] %s263
          %266 = dma.hbm_to_vmem [thread:$0]  %s2, 64, %s264, [#allocation8]
        $region24: #{tpu_custom_call.1} parent=11 // pred_fallthru
          _
        // Predicated region
        $region25: #{tpu_custom_call.1} parent=11 // pred_check
          %p267 = pneg %p104
        $region26: #{tpu_custom_call.1} parent=11 // pred_check_branch
          %269 = sbr.rel (%p267) target = $region28
        $region27: #{tpu_custom_call.1} parent=11 // pred_region
          %s271 = ssub.s32 768, 768
          %272 = vsyncadd [#allocation11], %s271
          %s273 = sshll.u32 [#allocation10], 4
          %s274 = int_to_ptr.vmem [resolvable:$true] %s273
          %279 = dma.hbm_to_vmem [thread:$0]  %s3, 768, %s274, [#allocation11], 128, 128, 8
        $region28: #{tpu_custom_call.1} parent=11 // pred_fallthru
          _
        // Predicated region
        $region29: #{tpu_custom_call.1} parent=11 // pred_check
          %p280 = pneg %p125
        $region30: #{tpu_custom_call.1} parent=11 // pred_check_branch
          %282 = sbr.rel (%p280) target = $region32
        $region31: #{tpu_custom_call.1} parent=11 // pred_region
          %s284 = ssub.s32 768, 768
          %285 = vsyncadd [#allocation11], %s284
          %s286 = sshll.u32 [#allocation12], 4
          %s287 = int_to_ptr.vmem [resolvable:$true] %s286
          %292 = dma.hbm_to_vmem [thread:$0]  %s4, 768, %s287, [#allocation11], 128, 128, 8
        $region32: #{tpu_custom_call.1} parent=11 // pred_fallthru
          _
      $region12: #{tpu_custom_call.1} parent=5 // pred_fallthru
        _
      %p293 = scmp.lt.s32.totalorder %s20, 8
      // Predicated region
      $region33: #{tpu_custom_call.1} parent=5 // pred_check
        %p294 = pneg %p293
      $region34: #{tpu_custom_call.1} parent=5 // pred_check_branch
        %296 = sbr.rel (%p294) target = $region36
      $region35: #{tpu_custom_call.1} parent=5 // pred_region
        // Predicated region
        $region37: #{tpu_custom_call.1} parent=35 // pred_check
          %p297 = pneg %p145
        $region38: #{tpu_custom_call.1} parent=35 // pred_check_branch
          %299 = sbr.rel (%p297) target = $region40
        $region39: #{tpu_custom_call.1} parent=35 // pred_region
          %p300 = scmp.lt.s32.totalorder %s20, 7
          %s301 = scalar_select %p300, %s20, 7
          %s302 = scalar_lea.vmem %s5, %s301
        $region40: #{tpu_custom_call.1} parent=35 // pred_fallthru
          _
        // Predicated region
        $region41: #{tpu_custom_call.1} parent=35 // pred_check
          %p303 = pneg %p171
        $region42: #{tpu_custom_call.1} parent=35 // pred_check_branch
          %305 = sbr.rel (%p303) target = $region44
        $region43: #{tpu_custom_call.1} parent=35 // pred_region
          %p306 = scmp.lt.s32.totalorder %s20, 7
          %s307 = scalar_select %p306, %s20, 7
          %s308 = scalar_lea.vmem %s6, %s307
        $region44: #{tpu_custom_call.1} parent=35 // pred_fallthru
          _
      $region36: #{tpu_custom_call.1} parent=5 // pred_fallthru
        _
      %p309 = scmp.le.s32.totalorder 1, %s20
      %p310 = scmp.lt.s32.totalorder %s20, 9
      %p311 = pnand %p309, %p310
      %p312 = pneg %p311
      // Predicated region
      $region45: #{tpu_custom_call.1} parent=5 // pred_check
        _
      $region46: #{tpu_custom_call.1} parent=5 // pred_check_branch
        %314 = sbr.rel (%p311) target = $region48
      $region47: #{tpu_custom_call.1} parent=5 // pred_region
        %s315 = ssub.s32 %s20, 1
        // Predicated region
        $region49: #{tpu_custom_call.1} parent=47 // pred_check
          %p316 = pneg %p41
        $region50: #{tpu_custom_call.1} parent=47 // pred_check_branch
          %318 = sbr.rel (%p316) target = $region52
        $region51: #{tpu_custom_call.1} parent=47 // pred_region
          %319 = dma.done [#allocation5], 64
        $region52: #{tpu_custom_call.1} parent=47 // pred_fallthru
          _
        // Predicated region
        $region53: #{tpu_custom_call.1} parent=47 // pred_check
          %p320 = pneg %p62
        $region54: #{tpu_custom_call.1} parent=47 // pred_check_branch
          %322 = sbr.rel (%p320) target = $region56
        $region55: #{tpu_custom_call.1} parent=47 // pred_region
          %323 = dma.done [#allocation8], 64
        $region56: #{tpu_custom_call.1} parent=47 // pred_fallthru
          _
        // Predicated region
        $region57: #{tpu_custom_call.1} parent=47 // pred_check
          %p324 = pneg %p83
        $region58: #{tpu_custom_call.1} parent=47 // pred_check_branch
          %326 = sbr.rel (%p324) target = $region60
        $region59: #{tpu_custom_call.1} parent=47 // pred_region
          %327 = dma.done [#allocation8], 64
        $region60: #{tpu_custom_call.1} parent=47 // pred_fallthru
          _
        // Predicated region
        $region61: #{tpu_custom_call.1} parent=47 // pred_check
          %p328 = pneg %p104
        $region62: #{tpu_custom_call.1} parent=47 // pred_check_branch
          %330 = sbr.rel (%p328) target = $region64
        $region63: #{tpu_custom_call.1} parent=47 // pred_region
          %331 = dma.done [#allocation11], 768
        $region64: #{tpu_custom_call.1} parent=47 // pred_fallthru
          _
        // Predicated region
        $region65: #{tpu_custom_call.1} parent=47 // pred_check
          %p332 = pneg %p125
        $region66: #{tpu_custom_call.1} parent=47 // pred_check_branch
          %334 = sbr.rel (%p332) target = $region68
        $region67: #{tpu_custom_call.1} parent=47 // pred_region
          %335 = dma.done [#allocation11], 768
        $region68: #{tpu_custom_call.1} parent=47 // pred_fallthru
          _
        %p336 = pneg %p41
        %p337 = pneg %p38
        %p338 = pneg %p62
        %p339 = pneg %p59
        %p340 = pneg %p83
        %p341 = pneg %p80
        %p342 = pneg %p104
        %p343 = pneg %p101
        %p344 = pneg %p125
        %p345 = pneg %p122
        %p346 = scmp.lt.s32.totalorder %s25, 7
        %s347 = scalar_select %p346, %s25, 7
        %s348 = scalar_lea.vmem %s5, %s347
        %p349 = pneg %p151
        %p350 = pneg %p148
        %p351 = scmp.lt.s32.totalorder %s25, 7
        %s352 = scalar_select %p351, %s25, 7
        %s353 = scalar_lea.vmem %s6, %s352
        %p354 = pneg %p177
        %p355 = pneg %p174
        %p356 = pneg %p198
        %p357 = pneg %p195
        %p358 = pneg %p219
        %p359 = pneg %p216
        %p360 = scmp.lt.s32.totalorder %s25, 7
        %s361 = scalar_select %p360, %s25, 7
        %s362 = scalar_lea.vmem %s5, %s361
        %p363 = scmp.lt.s32.totalorder %s25, 7
        %s364 = scalar_select %p363, %s25, 7
        %s365 = scalar_lea.vmem %s6, %s364
        %p367 = scmp.eq.s32.totalorder %s25, 0
        // Predicated region
        $region69: #{tpu_custom_call.1} parent=47 // pred_check
          %p368 = pneg %p367
        $region70: #{tpu_custom_call.1} parent=47 // pred_check_branch
          %370 = sbr.rel (%p368) target = $region72
        $region71: #{tpu_custom_call.1} parent=47 // pred_region
          %v371 = vld [vmem:[#allocation4] sm:$0x7]
          %v372 = vld [vmem:[#allocation7] sm:$0x7]
          %v373 = vsub.f32 %v371, %v372
          %v374 = vld [vmem:[#allocation10] sm:$0xff]
          %v375 = vld [vmem:[#allocation10 + $0x8] sm:$0xff]
          %s376 = scalar_lea.vmem [#allocation10], 16
          %v377 = vld [vmem:[%s376] sm:$0xff]
          %v378 = vld [vmem:[%s376 + $0x8] sm:$0xff]
          %v380 = vrot.slane %v373, 1
          %vm381 = vcmask 523264
          %v382 = vsel %vm381, %v380, 0
          %v385 = vsel %vm381, %v377, 0
          %v388 = vsel %vm381, %v378, 0
          %390 = vmatprep.subr.mxu0 0.0
          %391 = vmatpush1.xpose.msra.mxu0 %v385
          %392 = vmatprep.subr.mxu0 0.0
          %393 = vmatpush1.xpose.msra.mxu0 %v388
          %394 = vmatprep.subr.mxu0 0.0
          %395 = vmatpush1.xpose.msra.mxu0 0.0
          %396 = vmatprep.subr.mxu0 0.0
          %397 = vmatpush1.xpose.msra.mxu0 0.0
          %398 = vmatprep.subr.mxu0 0.0
          %399 = vmatpush1.xpose.msra.mxu0 0.0
          %400 = vmatprep.subr.mxu0 0.0
          %401 = vmatpush1.xpose.msra.mxu0 0.0
          %402 = vmatprep.subr.mxu0 0.0
          %403 = vmatpush1.xpose.msra.mxu0 0.0
          %404 = vmatprep.subr.mxu0 0.0
          %405 = vmatpush1.xpose.msra.mxu0 0.0
          %406 = vmatprep.subr.mxu0 0.0
          %407 = vmatpush1.xpose.msra.mxu0 0.0
          %408 = vmatprep.subr.mxu0 0.0
          %409 = vmatpush1.xpose.msra.mxu0 0.0
          %410 = vmatprep.subr.mxu0 0.0
          %411 = vmatpush1.xpose.msra.mxu0 0.0
          %412 = vmatprep.subr.mxu0 0.0
          %413 = vmatpush1.xpose.msra.mxu0 0.0
          %414 = vmatprep.subr.mxu0 0.0
          %415 = vmatpush1.xpose.msra.mxu0 0.0
          %416 = vmatprep.subr.mxu0 0.0
          %417 = vmatpush1.xpose.msra.mxu0 0.0
          %418 = vmatprep.subr.mxu0 0.0
          %419 = vmatpush1.xpose.msra.mxu0 0.0
          %420 = vmatprep.subr.mxu0 0.0
          %421 = vmatpush1.xpose.msra.mxu0 0.0
          %422 = vmatprep.subr.mxu0 0.0
          %423 = vmatpush1.xpose.msra.mxu0 0.0
          %424 = vmatprep.subr.mxu0 0.0
          %425 = vmatpush1.xpose.msra.mxu0 0.0
          %426 = vmatprep.subr.mxu0 0.0
          %427 = vmatpush1.xpose.msra.mxu0 0.0
          %428 = vmatprep.subr.mxu0 0.0
          %429 = vmatpush1.xpose.msra.mxu0 0.0
          %430 = vmatprep.subr.mxu0 0.0
          %431 = vmatpush1.xpose.msra.mxu0 0.0
          %432 = vmatprep.subr.mxu0 0.0
          %433 = vmatpush1.xpose.msra.mxu0 0.0
          %434 = vmatprep.subr.mxu0 0.0
          %435 = vmatpush1.xpose.msra.mxu0 0.0
          %436 = vmatprep.subr.mxu0 0.0
          %437 = vmatpush1.xpose.msra.mxu0 0.0
          %438 = vmatprep.subr.mxu0 0.0
          %439 = vmatpush1.xpose.msra.mxu0 0.0
          %440 = vmatprep.subr.mxu0 0.0
          %441 = vmatpush1.xpose.msra.mxu0 0.0
          %442 = vmatprep.subr.mxu0 0.0
          %443 = vmatpush1.xpose.msra.mxu0 0.0
          %444 = vmatprep.subr.mxu0 0.0
          %445 = vmatpush1.xpose.msra.mxu0 0.0
          %446 = vmatprep.subr.mxu0 0.0
          %447 = vmatpush1.xpose.msra.mxu0 0.0
          %448 = vmatprep.subr.mxu0 0.0
          %449 = vmatpush1.xpose.msra.mxu0 0.0
          %450 = vmatprep.subr.mxu0 0.0
          %451 = vmatpush1.xpose.msra.mxu0 0.0
          %452 = vmatprep.subr.mxu0 0.0
          %453 = vmatpush1.xpose.msra.mxu0 0.0
          %454 = vmatprep.mubr.f32.mxu0 0.0
          %455 = vmatmul.mubr.f32.gmra.mrb[0].mxu0 %v382
          %v456 = vpop.f32.mrb[0].mxu0
          %v457 = vadd.f32 0.0, %v456
          %v458 = vpop.f32.mrb[0].mxu0
          %459 = vdwg.mxu0
          %v460 = vsel %vm381, %v373, 0
          %v463 = vsel %vm381, %v374, 0
          %v466 = vsel %vm381, %v375, 0
          %468 = vmatprep.subr.mxu0 0.0
          %469 = vmatpush1.xpose.msra.mxu0 %v463
          %470 = vmatprep.subr.mxu0 0.0
          %471 = vmatpush1.xpose.msra.mxu0 %v466
          %472 = vmatprep.subr.mxu0 0.0
          %473 = vmatpush1.xpose.msra.mxu0 0.0
          %474 = vmatprep.subr.mxu0 0.0
          %475 = vmatpush1.xpose.msra.mxu0 0.0
          %476 = vmatprep.subr.mxu0 0.0
          %477 = vmatpush1.xpose.msra.mxu0 0.0
          %478 = vmatprep.subr.mxu0 0.0
          %479 = vmatpush1.xpose.msra.mxu0 0.0
          %480 = vmatprep.subr.mxu0 0.0
          %481 = vmatpush1.xpose.msra.mxu0 0.0
          %482 = vmatprep.subr.mxu0 0.0
          %483 = vmatpush1.xpose.msra.mxu0 0.0
          %484 = vmatprep.subr.mxu0 0.0
          %485 = vmatpush1.xpose.msra.mxu0 0.0
          %486 = vmatprep.subr.mxu0 0.0
          %487 = vmatpush1.xpose.msra.mxu0 0.0
          %488 = vmatprep.subr.mxu0 0.0
          %489 = vmatpush1.xpose.msra.mxu0 0.0
          %490 = vmatprep.subr.mxu0 0.0
          %491 = vmatpush1.xpose.msra.mxu0 0.0
          %492 = vmatprep.subr.mxu0 0.0
          %493 = vmatpush1.xpose.msra.mxu0 0.0
          %494 = vmatprep.subr.mxu0 0.0
          %495 = vmatpush1.xpose.msra.mxu0 0.0
          %496 = vmatprep.subr.mxu0 0.0
          %497 = vmatpush1.xpose.msra.mxu0 0.0
          %498 = vmatprep.subr.mxu0 0.0
          %499 = vmatpush1.xpose.msra.mxu0 0.0
          %500 = vmatprep.subr.mxu0 0.0
          %501 = vmatpush1.xpose.msra.mxu0 0.0
          %502 = vmatprep.subr.mxu0 0.0
          %503 = vmatpush1.xpose.msra.mxu0 0.0
          %504 = vmatprep.subr.mxu0 0.0
          %505 = vmatpush1.xpose.msra.mxu0 0.0
          %506 = vmatprep.subr.mxu0 0.0
          %507 = vmatpush1.xpose.msra.mxu0 0.0
          %508 = vmatprep.subr.mxu0 0.0
          %509 = vmatpush1.xpose.msra.mxu0 0.0
          %510 = vmatprep.subr.mxu0 0.0
          %511 = vmatpush1.xpose.msra.mxu0 0.0
          %512 = vmatprep.subr.mxu0 0.0
          %513 = vmatpush1.xpose.msra.mxu0 0.0
          %514 = vmatprep.subr.mxu0 0.0
          %515 = vmatpush1.xpose.msra.mxu0 0.0
          %516 = vmatprep.subr.mxu0 0.0
          %517 = vmatpush1.xpose.msra.mxu0 0.0
          %518 = vmatprep.subr.mxu0 0.0
          %519 = vmatpush1.xpose.msra.mxu0 0.0
          %520 = vmatprep.subr.mxu0 0.0
          %521 = vmatpush1.xpose.msra.mxu0 0.0
          %522 = vmatprep.subr.mxu0 0.0
          %523 = vmatpush1.xpose.msra.mxu0 0.0
          %524 = vmatprep.subr.mxu0 0.0
          %525 = vmatpush1.xpose.msra.mxu0 0.0
          %526 = vmatprep.subr.mxu0 0.0
          %527 = vmatpush1.xpose.msra.mxu0 0.0
          %528 = vmatprep.subr.mxu0 0.0
          %529 = vmatpush1.xpose.msra.mxu0 0.0
          %530 = vmatprep.subr.mxu0 0.0
          %531 = vmatpush1.xpose.msra.mxu0 0.0
          %532 = vmatprep.mubr.f32.mxu0 0.0
          %533 = vmatmul.mubr.f32.gmra.mrb[0].mxu0 %v460
          %v534 = vpop.f32.mrb[0].mxu0
          %v535 = vadd.f32 %v457, %v534
          %v536 = vpop.f32.mrb[0].mxu0
          %537 = vdwg.mxu0
          %s538 = scalar_lea.vmem [#allocation10], 32
          %v539 = vld [vmem:[%s538] sm:$0xff]
          %v540 = vld [vmem:[%s538 + $0x8] sm:$0xff]
          %v541 = vrot.slane %v373, 2
          %v542 = vsel %vm381, %v541, 0
          %v545 = vsel %vm381, %v539, 0
          %v548 = vsel %vm381, %v540, 0
          %550 = vmatprep.subr.mxu0 0.0
          %551 = vmatpush1.xpose.msra.mxu0 %v545
          %552 = vmatprep.subr.mxu0 0.0
          %553 = vmatpush1.xpose.msra.mxu0 %v548
          %554 = vmatprep.subr.mxu0 0.0
          %555 = vmatpush1.xpose.msra.mxu0 0.0
          %556 = vmatprep.subr.mxu0 0.0
          %557 = vmatpush1.xpose.msra.mxu0 0.0
          %558 = vmatprep.subr.mxu0 0.0
          %559 = vmatpush1.xpose.msra.mxu0 0.0
          %560 = vmatprep.subr.mxu0 0.0
          %561 = vmatpush1.xpose.msra.mxu0 0.0
          %562 = vmatprep.subr.mxu0 0.0
          %563 = vmatpush1.xpose.msra.mxu0 0.0
          %564 = vmatprep.subr.mxu0 0.0
          %565 = vmatpush1.xpose.msra.mxu0 0.0
          %566 = vmatprep.subr.mxu0 0.0
          %567 = vmatpush1.xpose.msra.mxu0 0.0
          %568 = vmatprep.subr.mxu0 0.0
          %569 = vmatpush1.xpose.msra.mxu0 0.0
          %570 = vmatprep.subr.mxu0 0.0
          %571 = vmatpush1.xpose.msra.mxu0 0.0
          %572 = vmatprep.subr.mxu0 0.0
          %573 = vmatpush1.xpose.msra.mxu0 0.0
          %574 = vmatprep.subr.mxu0 0.0
          %575 = vmatpush1.xpose.msra.mxu0 0.0
          %576 = vmatprep.subr.mxu0 0.0
          %577 = vmatpush1.xpose.msra.mxu0 0.0
          %578 = vmatprep.subr.mxu0 0.0
          %579 = vmatpush1.xpose.msra.mxu0 0.0
          %580 = vmatprep.subr.mxu0 0.0
          %581 = vmatpush1.xpose.msra.mxu0 0.0
          %582 = vmatprep.subr.mxu0 0.0
          %583 = vmatpush1.xpose.msra.mxu0 0.0
          %584 = vmatprep.subr.mxu0 0.0
          %585 = vmatpush1.xpose.msra.mxu0 0.0
          %586 = vmatprep.subr.mxu0 0.0
          %587 = vmatpush1.xpose.msra.mxu0 0.0
          %588 = vmatprep.subr.mxu0 0.0
          %589 = vmatpush1.xpose.msra.mxu0 0.0
          %590 = vmatprep.subr.mxu0 0.0
          %591 = vmatpush1.xpose.msra.mxu0 0.0
          %592 = vmatprep.subr.mxu0 0.0
          %593 = vmatpush1.xpose.msra.mxu0 0.0
          %594 = vmatprep.subr.mxu0 0.0
          %595 = vmatpush1.xpose.msra.mxu0 0.0
          %596 = vmatprep.subr.mxu0 0.0
          %597 = vmatpush1.xpose.msra.mxu0 0.0
          %598 = vmatprep.subr.mxu0 0.0
          %599 = vmatpush1.xpose.msra.mxu0 0.0
          %600 = vmatprep.subr.mxu0 0.0
          %601 = vmatpush1.xpose.msra.mxu0 0.0
          %602 = vmatprep.subr.mxu0 0.0
          %603 = vmatpush1.xpose.msra.mxu0 0.0
          %604 = vmatprep.subr.mxu0 0.0
          %605 = vmatpush1.xpose.msra.mxu0 0.0
          %606 = vmatprep.subr.mxu0 0.0
          %607 = vmatpush1.xpose.msra.mxu0 0.0
          %608 = vmatprep.subr.mxu0 0.0
          %609 = vmatpush1.xpose.msra.mxu0 0.0
          %610 = vmatprep.subr.mxu0 0.0
          %611 = vmatpush1.xpose.msra.mxu0 0.0
          %612 = vmatprep.subr.mxu0 0.0
          %613 = vmatpush1.xpose.msra.mxu0 0.0
          %614 = vmatprep.mubr.f32.mxu0 0.0
          %615 = vmatmul.mubr.f32.gmra.mrb[0].mxu0 %v542
          %v616 = vpop.f32.mrb[0].mxu0
          %v617 = vadd.f32 0.0, %v616
          %v618 = vpop.f32.mrb[0].mxu0
          %619 = vdwg.mxu0
          %v620 = vadd.f32 %v535, %v617
          %v621 = vld [vmem:[#allocation7] sm:$0x1]
          %v622 = vld [vmem:[#allocation9] sm:$0x1]
          %v623 = vsub.f32 %v621, %v622
          %v624 = vld [vmem:[#allocation12] sm:$0xff]
          %v625 = vld [vmem:[#allocation12 + $0x8] sm:$0xff]
          %vm626 = vcmask 130048
          %v628 = vsel %vm626, %v620, 0
          %630 = vmatprep.subr.mxu0 0.0
          %631 = vmatpush1.msra.mxu0 %v624
          %632 = vmatprep.subr.mxu0 0.0
          %633 = vmatpush1.msra.mxu0 %v625
          %634 = vmatprep.subr.mxu0 0.0
          %635 = vmatpush1.msra.mxu0 0.0
          %636 = vmatprep.subr.mxu0 0.0
          %637 = vmatpush1.msra.mxu0 0.0
          %638 = vmatprep.subr.mxu0 0.0
          %639 = vmatpush1.msra.mxu0 0.0
          %640 = vmatprep.subr.mxu0 0.0
          %641 = vmatpush1.msra.mxu0 0.0
          %642 = vmatprep.subr.mxu0 0.0
          %643 = vmatpush1.msra.mxu0 0.0
          %644 = vmatprep.subr.mxu0 0.0
          %645 = vmatpush1.msra.mxu0 0.0
          %646 = vmatprep.subr.mxu0 0.0
          %647 = vmatpush1.msra.mxu0 0.0
          %648 = vmatprep.subr.mxu0 0.0
          %649 = vmatpush1.msra.mxu0 0.0
          %650 = vmatprep.subr.mxu0 0.0
          %651 = vmatpush1.msra.mxu0 0.0
          %652 = vmatprep.subr.mxu0 0.0
          %653 = vmatpush1.msra.mxu0 0.0
          %654 = vmatprep.subr.mxu0 0.0
          %655 = vmatpush1.msra.mxu0 0.0
          %656 = vmatprep.subr.mxu0 0.0
          %657 = vmatpush1.msra.mxu0 0.0
          %658 = vmatprep.subr.mxu0 0.0
          %659 = vmatpush1.msra.mxu0 0.0
          %660 = vmatprep.subr.mxu0 0.0
          %661 = vmatpush1.msra.mxu0 0.0
          %662 = vmatprep.subr.mxu0 0.0
          %663 = vmatpush1.msra.mxu0 0.0
          %664 = vmatprep.subr.mxu0 0.0
          %665 = vmatpush1.msra.mxu0 0.0
          %666 = vmatprep.subr.mxu0 0.0
          %667 = vmatpush1.msra.mxu0 0.0
          %668 = vmatprep.subr.mxu0 0.0
          %669 = vmatpush1.msra.mxu0 0.0
          %670 = vmatprep.subr.mxu0 0.0
          %671 = vmatpush1.msra.mxu0 0.0
          %672 = vmatprep.subr.mxu0 0.0
          %673 = vmatpush1.msra.mxu0 0.0
          %674 = vmatprep.subr.mxu0 0.0
          %675 = vmatpush1.msra.mxu0 0.0
          %676 = vmatprep.subr.mxu0 0.0
          %677 = vmatpush1.msra.mxu0 0.0
          %678 = vmatprep.subr.mxu0 0.0
          %679 = vmatpush1.msra.mxu0 0.0
          %680 = vmatprep.subr.mxu0 0.0
          %681 = vmatpush1.msra.mxu0 0.0
          %682 = vmatprep.subr.mxu0 0.0
          %683 = vmatpush1.msra.mxu0 0.0
          %684 = vmatprep.subr.mxu0 0.0
          %685 = vmatpush1.msra.mxu0 0.0
          %686 = vmatprep.subr.mxu0 0.0
          %687 = vmatpush1.msra.mxu0 0.0
          %688 = vmatprep.subr.mxu0 0.0
          %689 = vmatpush1.msra.mxu0 0.0
          %690 = vmatprep.subr.mxu0 0.0
          %691 = vmatpush1.msra.mxu0 0.0
          %692 = vmatprep.subr.mxu0 0.0
          %693 = vmatpush1.msra.mxu0 0.0
          %694 = vmatprep.mubr.f32.mxu0 0.0
          %695 = vmatmul.mubr.f32.gmra.mrb[0].mxu0 %v628
          %v696 = vpop.f32.mrb[0].mxu0
          %v697 = vadd.f32 0.0, %v696
          %v698 = vpop.f32.mrb[0].mxu0
          %699 = vdwg.mxu0
          %v700 = vadd.f32 %v623, %v697
          %v701 = vld [vmem:[#allocation7 + $0x1] sm:$0x1]
          %v702 = vld [vmem:[#allocation9 + $0x1] sm:$0x1]
          %v703 = vsub.f32 %v701, %v702
          %s704 = scalar_lea.vmem [#allocation12], 16
          %v705 = vld [vmem:[%s704] sm:$0xff]
          %v706 = vld [vmem:[%s704 + $0x8] sm:$0xff]
          %707 = vmatprep.subr.mxu0 0.0
          %708 = vmatpush1.msra.mxu0 %v705
          %709 = vmatprep.subr.mxu0 0.0
          %710 = vmatpush1.msra.mxu0 %v706
          %711 = vmatprep.subr.mxu0 0.0
          %712 = vmatpush1.msra.mxu0 0.0
          %713 = vmatprep.subr.mxu0 0.0
          %714 = vmatpush1.msra.mxu0 0.0
          %715 = vmatprep.subr.mxu0 0.0
          %716 = vmatpush1.msra.mxu0 0.0
          %717 = vmatprep.subr.mxu0 0.0
          %718 = vmatpush1.msra.mxu0 0.0
          %719 = vmatprep.subr.mxu0 0.0
          %720 = vmatpush1.msra.mxu0 0.0
          %721 = vmatprep.subr.mxu0 0.0
          %722 = vmatpush1.msra.mxu0 0.0
          %723 = vmatprep.subr.mxu0 0.0
          %724 = vmatpush1.msra.mxu0 0.0
          %725 = vmatprep.subr.mxu0 0.0
          %726 = vmatpush1.msra.mxu0 0.0
          %727 = vmatprep.subr.mxu0 0.0
          %728 = vmatpush1.msra.mxu0 0.0
          %729 = vmatprep.subr.mxu0 0.0
          %730 = vmatpush1.msra.mxu0 0.0
          %731 = vmatprep.subr.mxu0 0.0
          %732 = vmatpush1.msra.mxu0 0.0
          %733 = vmatprep.subr.mxu0 0.0
          %734 = vmatpush1.msra.mxu0 0.0
          %735 = vmatprep.subr.mxu0 0.0
          %736 = vmatpush1.msra.mxu0 0.0
          %737 = vmatprep.subr.mxu0 0.0
          %738 = vmatpush1.msra.mxu0 0.0
          %739 = vmatprep.subr.mxu0 0.0
          %740 = vmatpush1.msra.mxu0 0.0
          %741 = vmatprep.subr.mxu0 0.0
          %742 = vmatpush1.msra.mxu0 0.0
          %743 = vmatprep.subr.mxu0 0.0
          %744 = vmatpush1.msra.mxu0 0.0
          %745 = vmatprep.subr.mxu0 0.0
          %746 = vmatpush1.msra.mxu0 0.0
          %747 = vmatprep.subr.mxu0 0.0
          %748 = vmatpush1.msra.mxu0 0.0
          %749 = vmatprep.subr.mxu0 0.0
          %750 = vmatpush1.msra.mxu0 0.0
          %751 = vmatprep.subr.mxu0 0.0
          %752 = vmatpush1.msra.mxu0 0.0
          %753 = vmatprep.subr.mxu0 0.0
          %754 = vmatpush1.msra.mxu0 0.0
          %755 = vmatprep.subr.mxu0 0.0
          %756 = vmatpush1.msra.mxu0 0.0
          %757 = vmatprep.subr.mxu0 0.0
          %758 = vmatpush1.msra.mxu0 0.0
          %759 = vmatprep.subr.mxu0 0.0
          %760 = vmatpush1.msra.mxu0 0.0
          %761 = vmatprep.subr.mxu0 0.0
          %762 = vmatpush1.msra.mxu0 0.0
          %763 = vmatprep.subr.mxu0 0.0
          %764 = vmatpush1.msra.mxu0 0.0
          %765 = vmatprep.subr.mxu0 0.0
          %766 = vmatpush1.msra.mxu0 0.0
          %767 = vmatprep.subr.mxu0 0.0
          %768 = vmatpush1.msra.mxu0 0.0
          %769 = vmatprep.subr.mxu0 0.0
          %770 = vmatpush1.msra.mxu0 0.0
          %771 = vmatprep.mubr.f32.mxu0 0.0
          %772 = vmatmul.mubr.f32.gmra.mrb[0].mxu0 %v628
          %v773 = vpop.f32.mrb[0].mxu0
          %v774 = vadd.f32 0.0, %v773
          %v775 = vpop.f32.mrb[0].mxu0
          %776 = vdwg.mxu0
          %v777 = vadd.f32 %v703, %v774
          %v778 = vld [vmem:[#allocation7 + $0x2] sm:$0x1]
          %v779 = vld [vmem:[#allocation9 + $0x2] sm:$0x1]
          %v780 = vsub.f32 %v778, %v779
          %s781 = scalar_lea.vmem [#allocation12], 32
          %v782 = vld [vmem:[%s781] sm:$0xff]
          %v783 = vld [vmem:[%s781 + $0x8] sm:$0xff]
          %784 = vmatprep.subr.mxu0 0.0
          %785 = vmatpush1.msra.mxu0 %v782
          %786 = vmatprep.subr.mxu0 0.0
          %787 = vmatpush1.msra.mxu0 %v783
          %788 = vmatprep.subr.mxu0 0.0
          %789 = vmatpush1.msra.mxu0 0.0
          %790 = vmatprep.subr.mxu0 0.0
          %791 = vmatpush1.msra.mxu0 0.0
          %792 = vmatprep.subr.mxu0 0.0
          %793 = vmatpush1.msra.mxu0 0.0
          %794 = vmatprep.subr.mxu0 0.0
          %795 = vmatpush1.msra.mxu0 0.0
          %796 = vmatprep.subr.mxu0 0.0
          %797 = vmatpush1.msra.mxu0 0.0
          %798 = vmatprep.subr.mxu0 0.0
          %799 = vmatpush1.msra.mxu0 0.0
          %800 = vmatprep.subr.mxu0 0.0
          %801 = vmatpush1.msra.mxu0 0.0
          %802 = vmatprep.subr.mxu0 0.0
          %803 = vmatpush1.msra.mxu0 0.0
          %804 = vmatprep.subr.mxu0 0.0
          %805 = vmatpush1.msra.mxu0 0.0
          %806 = vmatprep.subr.mxu0 0.0
          %807 = vmatpush1.msra.mxu0 0.0
          %808 = vmatprep.subr.mxu0 0.0
          %809 = vmatpush1.msra.mxu0 0.0
          %810 = vmatprep.subr.mxu0 0.0
          %811 = vmatpush1.msra.mxu0 0.0
          %812 = vmatprep.subr.mxu0 0.0
          %813 = vmatpush1.msra.mxu0 0.0
          %814 = vmatprep.subr.mxu0 0.0
          %815 = vmatpush1.msra.mxu0 0.0
          %816 = vmatprep.subr.mxu0 0.0
          %817 = vmatpush1.msra.mxu0 0.0
          %818 = vmatprep.subr.mxu0 0.0
          %819 = vmatpush1.msra.mxu0 0.0
          %820 = vmatprep.subr.mxu0 0.0
          %821 = vmatpush1.msra.mxu0 0.0
          %822 = vmatprep.subr.mxu0 0.0
          %823 = vmatpush1.msra.mxu0 0.0
          %824 = vmatprep.subr.mxu0 0.0
          %825 = vmatpush1.msra.mxu0 0.0
          %826 = vmatprep.subr.mxu0 0.0
          %827 = vmatpush1.msra.mxu0 0.0
          %828 = vmatprep.subr.mxu0 0.0
          %829 = vmatpush1.msra.mxu0 0.0
          %830 = vmatprep.subr.mxu0 0.0
          %831 = vmatpush1.msra.mxu0 0.0
          %832 = vmatprep.subr.mxu0 0.0
          %833 = vmatpush1.msra.mxu0 0.0
          %834 = vmatprep.subr.mxu0 0.0
          %835 = vmatpush1.msra.mxu0 0.0
          %836 = vmatprep.subr.mxu0 0.0
          %837 = vmatpush1.msra.mxu0 0.0
          %838 = vmatprep.subr.mxu0 0.0
          %839 = vmatpush1.msra.mxu0 0.0
          %840 = vmatprep.subr.mxu0 0.0
          %841 = vmatpush1.msra.mxu0 0.0
          %842 = vmatprep.subr.mxu0 0.0
          %843 = vmatpush1.msra.mxu0 0.0
          %844 = vmatprep.subr.mxu0 0.0
          %845 = vmatpush1.msra.mxu0 0.0
          %846 = vmatprep.subr.mxu0 0.0
          %847 = vmatpush1.msra.mxu0 0.0
          %848 = vmatprep.mubr.f32.mxu0 0.0
          %849 = vmatmul.mubr.f32.gmra.mrb[0].mxu0 %v628
          %v850 = vpop.f32.mrb[0].mxu0
          %v851 = vadd.f32 0.0, %v850
          %v852 = vpop.f32.mrb[0].mxu0
          %853 = vdwg.mxu0
          %v854 = vadd.f32 %v780, %v851
          %v856 = vrot.slane %v777, 7
          %v859 = vrot.slane %v854, 6
          %vm861 = vcmask 1040384
          %v862 = vsel %vm861, %v700, %v856
          %vm863 = vcmask 1041408
          %v864 = vsel %vm863, %v862, %v859
          %vm865 = vcmask 518144
          %866 = vst.msk [vmem:[#allocation2] sm:$0x7] %vm865, %v864
          %867 = vst.msk [vmem:[#allocation3] sm:$0x7] %vm865, 0.0
          %vm868 = vcmask 0
          %869 = vst.msk [vmem:[#allocation13] sm:$0x1] %vm868, 0.0
        $region72: #{tpu_custom_call.1} parent=47 // pred_fallthru
          _
        %v870 = vld [vmem:[#allocation2] sm:$0x7]
        %v871 = vld [vmem:[%s362] sm:$0x1]
        %v872 = vld [vmem:[%s365] sm:$0x1]
        %v873 = vlaneseq
        %v874 = vshrl.u32 %v873, 7
        %v875 = vadd.s32 %v874, 8
        %v876 = vadd.s32 %v874, 16
        %v877 = vadd.s32 %v874, 24
        %v878 = vadd.s32 %v874, 32
        %v879 = vadd.s32 %v874, 40
        %v880 = vadd.s32 %v874, 48
        %v881 = vadd.s32 %v874, 56
        %v882 = vlaneseq
        %v883 = vshrl.u32 %v882, 7
        %v884 = vsub.s32 0, %v883
        %v885 = vrot.slane %v871, %v884
        %vm886 = vcmp.eq.s32.totalorder %v874, %v885
        %vm887 = vcmp.eq.s32.totalorder %v875, %v885
        %vm888 = vcmp.eq.s32.totalorder %v876, %v885
        %vm889 = vcmp.eq.s32.totalorder %v877, %v885
        %vm890 = vcmp.eq.s32.totalorder %v878, %v885
        %vm891 = vcmp.eq.s32.totalorder %v879, %v885
        %vm892 = vcmp.eq.s32.totalorder %v880, %v885
        %vm893 = vcmp.eq.s32.totalorder %v881, %v885
        %v894 = vsel %vm886, 1, 0
        %v895 = vsel %vm887, 1, 0
        %v896 = vsel %vm888, 1, 0
        %v897 = vsel %vm889, 1, 0
        %v898 = vsel %vm890, 1, 0
        %v899 = vsel %vm891, 1, 0
        %v900 = vsel %vm892, 1, 0
        %v901 = vsel %vm893, 1, 0
        %v902 = vcvt.s32.f32 %v894
        %v903 = vcvt.s32.f32 %v895
        %v904 = vcvt.s32.f32 %v896
        %v905 = vcvt.s32.f32 %v897
        %v906 = vcvt.s32.f32 %v898
        %v907 = vcvt.s32.f32 %v899
        %v908 = vcvt.s32.f32 %v900
        %v909 = vcvt.s32.f32 %v901
        %v910 = vpack.c.bf16 %v903, %v902
        %v911 = vpack.c.bf16 %v905, %v904
        %v912 = vpack.c.bf16 %v907, %v906
        %v913 = vpack.c.bf16 %v909, %v908
        %v914 = vpack.c.bf16 %v870, %v870
        %vm915 = vcmask 523264
        %v917 = vsel %vm915, %v914, 0
        %919 = vmatprep.subr.bf16.mxu0 0
        %920 = vmatpush1.bf16.msra.mxu0 %v910
        %921 = vmatprep.subr.bf16.mxu0 0
        %922 = vmatpush1.bf16.msra.mxu0 %v911
        %923 = vmatprep.subr.bf16.mxu0 0
        %924 = vmatpush1.bf16.msra.mxu0 %v912
        %925 = vmatprep.subr.bf16.mxu0 0
        %926 = vmatpush1.bf16.msra.mxu0 %v913
        %927 = vmatprep.subr.bf16.mxu0 0
        %928 = vmatpush1.bf16.msra.mxu0 0
        %929 = vmatprep.subr.bf16.mxu0 0
        %930 = vmatpush1.bf16.msra.mxu0 0
        %931 = vmatprep.subr.bf16.mxu0 0
        %932 = vmatpush1.bf16.msra.mxu0 0
        %933 = vmatprep.subr.bf16.mxu0 0
        %934 = vmatpush1.bf16.msra.mxu0 0
        %935 = vmatprep.subr.bf16.mxu0 0
        %936 = vmatpush1.bf16.msra.mxu0 0
        %937 = vmatprep.subr.bf16.mxu0 0
        %938 = vmatpush1.bf16.msra.mxu0 0
        %939 = vmatprep.subr.bf16.mxu0 0
        %940 = vmatpush1.bf16.msra.mxu0 0
        %941 = vmatprep.subr.bf16.mxu0 0
        %942 = vmatpush1.bf16.msra.mxu0 0
        %943 = vmatprep.subr.bf16.mxu0 0
        %944 = vmatpush1.bf16.msra.mxu0 0
        %945 = vmatprep.subr.bf16.mxu0 0
        %946 = vmatpush1.bf16.msra.mxu0 0
        %947 = vmatprep.subr.bf16.mxu0 0
        %948 = vmatpush1.bf16.msra.mxu0 0
        %949 = vmatprep.subr.bf16.mxu0 0
        %950 = vmatpush1.bf16.msra.mxu0 0
        %951 = vmatprep.mubr.bf16.mxu0 0
        %952 = vmatmul.mubr.bf16.gmra.mrb[0].mxu0 %v917
        %v953 = vpop.f32.mrb[0].mxu0
        %v954 = vadd.f32 0.0, %v953
        %v955 = vpop.f32.mrb[0].mxu0
        %v956 = vpop.f32.mrb[0].mxu0
        %v957 = vpop.f32.mrb[0].mxu0
        %958 = vdwg.mxu0
        %v959 = vsub.f32 %v870, %v954
        %v961 = vlaneseq
        %v962 = vshrl.u32 %v961, 7
        %v963 = vsub.s32 0, %v962
        %v964 = vrot.slane %v872, %v963
        %v966 = vmul.f32 %v964, %v959
        %v967 = vld [vmem:[#allocation13] sm:$0x1]
        %v968 = vmul.f32 %v966, %v959
        %vm969 = vcmask 518144
        %v970 = vsel %vm969, %v968, 0.0
        %971 = vadd.xlane.f32.xlu0 %v970
        %v972 = vpop.xlane.xlu0 %971
        %v973 = vrot.slane %v972, 4
        %v974 = vadd.f32 %v972, %v973
        %v975 = vrot.slane %v974, 2
        %v976 = vadd.f32 %v974, %v975
        %v977 = vrot.slane %v976, 1
        %v978 = vadd.f32 %v976, %v977
        %s979 = vtos %v978
        %v980 = vstv %s979
        %v981 = vadd.f32 %v967, %v980
        %vm982 = vcmask 0
        %983 = vst.msk [vmem:[#allocation13] sm:$0x1] %vm982, %v981
        %v984 = vpack.c.bf16 %v966, %v966
        %v986 = vsel %vm915, %v984, 0
        %v989 = vsel %vm915, %v910, 0
        %v992 = vsel %vm915, %v911, 0
        %v995 = vsel %vm915, %v912, 0
        %v998 = vsel %vm915, %v913, 0
        %1000 = vmatprep.subr.bf16.mxu0 0
        %1001 = vmatpush1.bf16.xpose.msra.mxu0 %v989
        %1002 = vmatprep.subr.bf16.mxu0 0
        %1003 = vmatpush1.bf16.xpose.msra.mxu0 %v992
        %1004 = vmatprep.subr.bf16.mxu0 0
        %1005 = vmatpush1.bf16.xpose.msra.mxu0 %v995
        %1006 = vmatprep.subr.bf16.mxu0 0
        %1007 = vmatpush1.bf16.xpose.msra.mxu0 %v998
        %1008 = vmatprep.subr.bf16.mxu0 0
        %1009 = vmatpush1.bf16.xpose.msra.mxu0 0
        %1010 = vmatprep.subr.bf16.mxu0 0
        %1011 = vmatpush1.bf16.xpose.msra.mxu0 0
        %1012 = vmatprep.subr.bf16.mxu0 0
        %1013 = vmatpush1.bf16.xpose.msra.mxu0 0
        %1014 = vmatprep.subr.bf16.mxu0 0
        %1015 = vmatpush1.bf16.xpose.msra.mxu0 0
        %1016 = vmatprep.subr.bf16.mxu0 0
        %1017 = vmatpush1.bf16.xpose.msra.mxu0 0
        %1018 = vmatprep.subr.bf16.mxu0 0
        %1019 = vmatpush1.bf16.xpose.msra.mxu0 0
        %1020 = vmatprep.subr.bf16.mxu0 0
        %1021 = vmatpush1.bf16.xpose.msra.mxu0 0
        %1022 = vmatprep.subr.bf16.mxu0 0
        %1023 = vmatpush1.bf16.xpose.msra.mxu0 0
        %1024 = vmatprep.subr.bf16.mxu0 0
        %1025 = vmatpush1.bf16.xpose.msra.mxu0 0
        %1026 = vmatprep.subr.bf16.mxu0 0
        %1027 = vmatpush1.bf16.xpose.msra.mxu0 0
        %1028 = vmatprep.subr.bf16.mxu0 0
        %1029 = vmatpush1.bf16.xpose.msra.mxu0 0
        %1030 = vmatprep.subr.bf16.mxu0 0
        %1031 = vmatpush1.bf16.xpose.msra.mxu0 0
        %1032 = vmatprep.mubr.bf16.mxu0 0
        %1033 = vmatmul.mubr.bf16.gmra.mrb[0].mxu0 %v986
        %v1034 = vpop.f32.mrb[0].mxu0
        %v1035 = vadd.f32 0.0, %v1034
        %v1036 = vpop.f32.mrb[0].mxu0
        %v1037 = vpop.f32.mrb[0].mxu0
        %v1038 = vpop.f32.mrb[0].mxu0
        %1039 = vdwg.mxu0
        %v1040 = vld [vmem:[#allocation3] sm:$0x7]
        %v1041 = vsub.f32 %v966, %v1035
        %v1042 = vadd.f32 %v1040, %v1041
        %1043 = vst.msk [vmem:[#allocation3] sm:$0x7] %vm969, %v1042
        %p1044 = scmp.eq.s32.totalorder %s25, 7
        // Predicated region
        $region73: #{tpu_custom_call.1} parent=47 // pred_check
          %p1045 = pneg %p1044
        $region74: #{tpu_custom_call.1} parent=47 // pred_check_branch
          %1047 = sbr.rel (%p1045) target = $region76
        $region75: #{tpu_custom_call.1} parent=47 // pred_region
          %v1048 = vld [vmem:[#allocation13] sm:$0x1]
          %v1049 = vmul.f32 %v1048, 0.0078125
          %1050 = vst.msk [vmem:[#allocation13] sm:$0x1] %vm982, %v1049
          %v1051 = vld [vmem:[#allocation3] sm:$0x7]
          %v1052 = vmul.f32 %v1051, 0.015625
          %v1053 = vld [vmem:[#allocation12] sm:$0xff]
          %v1054 = vld [vmem:[#allocation12 + $0x8] sm:$0xff]
          %s1055 = scalar_lea.vmem [#allocation12], 16
          %v1056 = vld [vmem:[%s1055] sm:$0xff]
          %v1057 = vld [vmem:[%s1055 + $0x8] sm:$0xff]
          %v1059 = vrot.slane %v1052, 1
          %v1060 = vsel %vm915, %v1059, 0
          %v1063 = vsel %vm915, %v1056, 0
          %v1066 = vsel %vm915, %v1057, 0
          %1068 = vmatprep.subr.mxu0 0.0
          %1069 = vmatpush1.xpose.msra.mxu0 %v1063
          %1070 = vmatprep.subr.mxu0 0.0
          %1071 = vmatpush1.xpose.msra.mxu0 %v1066
          %1072 = vmatprep.subr.mxu0 0.0
          %1073 = vmatpush1.xpose.msra.mxu0 0.0
          %1074 = vmatprep.subr.mxu0 0.0
          %1075 = vmatpush1.xpose.msra.mxu0 0.0
          %1076 = vmatprep.subr.mxu0 0.0
          %1077 = vmatpush1.xpose.msra.mxu0 0.0
          %1078 = vmatprep.subr.mxu0 0.0
          %1079 = vmatpush1.xpose.msra.mxu0 0.0
          %1080 = vmatprep.subr.mxu0 0.0
          %1081 = vmatpush1.xpose.msra.mxu0 0.0
          %1082 = vmatprep.subr.mxu0 0.0
          %1083 = vmatpush1.xpose.msra.mxu0 0.0
          %1084 = vmatprep.subr.mxu0 0.0
          %1085 = vmatpush1.xpose.msra.mxu0 0.0
          %1086 = vmatprep.subr.mxu0 0.0
          %1087 = vmatpush1.xpose.msra.mxu0 0.0
          %1088 = vmatprep.subr.mxu0 0.0
          %1089 = vmatpush1.xpose.msra.mxu0 0.0
          %1090 = vmatprep.subr.mxu0 0.0
          %1091 = vmatpush1.xpose.msra.mxu0 0.0
          %1092 = vmatprep.subr.mxu0 0.0
          %1093 = vmatpush1.xpose.msra.mxu0 0.0
          %1094 = vmatprep.subr.mxu0 0.0
          %1095 = vmatpush1.xpose.msra.mxu0 0.0
          %1096 = vmatprep.subr.mxu0 0.0
          %1097 = vmatpush1.xpose.msra.mxu0 0.0
          %1098 = vmatprep.subr.mxu0 0.0
          %1099 = vmatpush1.xpose.msra.mxu0 0.0
          %1100 = vmatprep.subr.mxu0 0.0
          %1101 = vmatpush1.xpose.msra.mxu0 0.0
          %1102 = vmatprep.subr.mxu0 0.0
          %1103 = vmatpush1.xpose.msra.mxu0 0.0
          %1104 = vmatprep.subr.mxu0 0.0
          %1105 = vmatpush1.xpose.msra.mxu0 0.0
          %1106 = vmatprep.subr.mxu0 0.0
          %1107 = vmatpush1.xpose.msra.mxu0 0.0
          %1108 = vmatprep.subr.mxu0 0.0
          %1109 = vmatpush1.xpose.msra.mxu0 0.0
          %1110 = vmatprep.subr.mxu0 0.0
          %1111 = vmatpush1.xpose.msra.mxu0 0.0
          %1112 = vmatprep.subr.mxu0 0.0
          %1113 = vmatpush1.xpose.msra.mxu0 0.0
          %1114 = vmatprep.subr.mxu0 0.0
          %1115 = vmatpush1.xpose.msra.mxu0 0.0
          %1116 = vmatprep.subr.mxu0 0.0
          %1117 = vmatpush1.xpose.msra.mxu0 0.0
          %1118 = vmatprep.subr.mxu0 0.0
          %1119 = vmatpush1.xpose.msra.mxu0 0.0
          %1120 = vmatprep.subr.mxu0 0.0
          %1121 = vmatpush1.xpose.msra.mxu0 0.0
          %1122 = vmatprep.subr.mxu0 0.0
          %1123 = vmatpush1.xpose.msra.mxu0 0.0
          %1124 = vmatprep.subr.mxu0 0.0
          %1125 = vmatpush1.xpose.msra.mxu0 0.0
          %1126 = vmatprep.subr.mxu0 0.0
          %1127 = vmatpush1.xpose.msra.mxu0 0.0
          %1128 = vmatprep.subr.mxu0 0.0
          %1129 = vmatpush1.xpose.msra.mxu0 0.0
          %1130 = vmatprep.subr.mxu0 0.0
          %1131 = vmatpush1.xpose.msra.mxu0 0.0
          %1132 = vmatprep.mubr.f32.mxu0 0.0
          %1133 = vmatmul.mubr.f32.gmra.mrb[0].mxu0 %v1060
          %v1134 = vpop.f32.mrb[0].mxu0
          %v1135 = vadd.f32 0.0, %v1134
          %v1136 = vpop.f32.mrb[0].mxu0
          %1137 = vdwg.mxu0
          %v1138 = vsel %vm915, %v1052, 0
          %v1141 = vsel %vm915, %v1053, 0
          %v1144 = vsel %vm915, %v1054, 0
          %1146 = vmatprep.subr.mxu0 0.0
          %1147 = vmatpush1.xpose.msra.mxu0 %v1141
          %1148 = vmatprep.subr.mxu0 0.0
          %1149 = vmatpush1.xpose.msra.mxu0 %v1144
          %1150 = vmatprep.subr.mxu0 0.0
          %1151 = vmatpush1.xpose.msra.mxu0 0.0
          %1152 = vmatprep.subr.mxu0 0.0
          %1153 = vmatpush1.xpose.msra.mxu0 0.0
          %1154 = vmatprep.subr.mxu0 0.0
          %1155 = vmatpush1.xpose.msra.mxu0 0.0
          %1156 = vmatprep.subr.mxu0 0.0
          %1157 = vmatpush1.xpose.msra.mxu0 0.0
          %1158 = vmatprep.subr.mxu0 0.0
          %1159 = vmatpush1.xpose.msra.mxu0 0.0
          %1160 = vmatprep.subr.mxu0 0.0
          %1161 = vmatpush1.xpose.msra.mxu0 0.0
          %1162 = vmatprep.subr.mxu0 0.0
          %1163 = vmatpush1.xpose.msra.mxu0 0.0
          %1164 = vmatprep.subr.mxu0 0.0
          %1165 = vmatpush1.xpose.msra.mxu0 0.0
          %1166 = vmatprep.subr.mxu0 0.0
          %1167 = vmatpush1.xpose.msra.mxu0 0.0
          %1168 = vmatprep.subr.mxu0 0.0
          %1169 = vmatpush1.xpose.msra.mxu0 0.0
          %1170 = vmatprep.subr.mxu0 0.0
          %1171 = vmatpush1.xpose.msra.mxu0 0.0
          %1172 = vmatprep.subr.mxu0 0.0
          %1173 = vmatpush1.xpose.msra.mxu0 0.0
          %1174 = vmatprep.subr.mxu0 0.0
          %1175 = vmatpush1.xpose.msra.mxu0 0.0
          %1176 = vmatprep.subr.mxu0 0.0
          %1177 = vmatpush1.xpose.msra.mxu0 0.0
          %1178 = vmatprep.subr.mxu0 0.0
          %1179 = vmatpush1.xpose.msra.mxu0 0.0
          %1180 = vmatprep.subr.mxu0 0.0
          %1181 = vmatpush1.xpose.msra.mxu0 0.0
          %1182 = vmatprep.subr.mxu0 0.0
          %1183 = vmatpush1.xpose.msra.mxu0 0.0
          %1184 = vmatprep.subr.mxu0 0.0
          %1185 = vmatpush1.xpose.msra.mxu0 0.0
          %1186 = vmatprep.subr.mxu0 0.0
          %1187 = vmatpush1.xpose.msra.mxu0 0.0
          %1188 = vmatprep.subr.mxu0 0.0
          %1189 = vmatpush1.xpose.msra.mxu0 0.0
          %1190 = vmatprep.subr.mxu0 0.0
          %1191 = vmatpush1.xpose.msra.mxu0 0.0
          %1192 = vmatprep.subr.mxu0 0.0
          %1193 = vmatpush1.xpose.msra.mxu0 0.0
          %1194 = vmatprep.subr.mxu0 0.0
          %1195 = vmatpush1.xpose.msra.mxu0 0.0
          %1196 = vmatprep.subr.mxu0 0.0
          %1197 = vmatpush1.xpose.msra.mxu0 0.0
          %1198 = vmatprep.subr.mxu0 0.0
          %1199 = vmatpush1.xpose.msra.mxu0 0.0
          %1200 = vmatprep.subr.mxu0 0.0
          %1201 = vmatpush1.xpose.msra.mxu0 0.0
          %1202 = vmatprep.subr.mxu0 0.0
          %1203 = vmatpush1.xpose.msra.mxu0 0.0
          %1204 = vmatprep.subr.mxu0 0.0
          %1205 = vmatpush1.xpose.msra.mxu0 0.0
          %1206 = vmatprep.subr.mxu0 0.0
          %1207 = vmatpush1.xpose.msra.mxu0 0.0
          %1208 = vmatprep.subr.mxu0 0.0
          %1209 = vmatpush1.xpose.msra.mxu0 0.0
          %1210 = vmatprep.mubr.f32.mxu0 0.0
          %1211 = vmatmul.mubr.f32.gmra.mrb[0].mxu0 %v1138
          %v1212 = vpop.f32.mrb[0].mxu0
          %v1213 = vadd.f32 %v1135, %v1212
          %v1214 = vpop.f32.mrb[0].mxu0
          %1215 = vdwg.mxu0
          %s1216 = scalar_lea.vmem [#allocation12], 32
          %v1217 = vld [vmem:[%s1216] sm:$0xff]
          %v1218 = vld [vmem:[%s1216 + $0x8] sm:$0xff]
          %v1219 = vrot.slane %v1052, 2
          %v1220 = vsel %vm915, %v1219, 0
          %v1223 = vsel %vm915, %v1217, 0
          %v1226 = vsel %vm915, %v1218, 0
          %1228 = vmatprep.subr.mxu0 0.0
          %1229 = vmatpush1.xpose.msra.mxu0 %v1223
          %1230 = vmatprep.subr.mxu0 0.0
          %1231 = vmatpush1.xpose.msra.mxu0 %v1226
          %1232 = vmatprep.subr.mxu0 0.0
          %1233 = vmatpush1.xpose.msra.mxu0 0.0
          %1234 = vmatprep.subr.mxu0 0.0
          %1235 = vmatpush1.xpose.msra.mxu0 0.0
          %1236 = vmatprep.subr.mxu0 0.0
          %1237 = vmatpush1.xpose.msra.mxu0 0.0
          %1238 = vmatprep.subr.mxu0 0.0
          %1239 = vmatpush1.xpose.msra.mxu0 0.0
          %1240 = vmatprep.subr.mxu0 0.0
          %1241 = vmatpush1.xpose.msra.mxu0 0.0
          %1242 = vmatprep.subr.mxu0 0.0
          %1243 = vmatpush1.xpose.msra.mxu0 0.0
          %1244 = vmatprep.subr.mxu0 0.0
          %1245 = vmatpush1.xpose.msra.mxu0 0.0
          %1246 = vmatprep.subr.mxu0 0.0
          %1247 = vmatpush1.xpose.msra.mxu0 0.0
          %1248 = vmatprep.subr.mxu0 0.0
          %1249 = vmatpush1.xpose.msra.mxu0 0.0
          %1250 = vmatprep.subr.mxu0 0.0
          %1251 = vmatpush1.xpose.msra.mxu0 0.0
          %1252 = vmatprep.subr.mxu0 0.0
          %1253 = vmatpush1.xpose.msra.mxu0 0.0
          %1254 = vmatprep.subr.mxu0 0.0
          %1255 = vmatpush1.xpose.msra.mxu0 0.0
          %1256 = vmatprep.subr.mxu0 0.0
          %1257 = vmatpush1.xpose.msra.mxu0 0.0
          %1258 = vmatprep.subr.mxu0 0.0
          %1259 = vmatpush1.xpose.msra.mxu0 0.0
          %1260 = vmatprep.subr.mxu0 0.0
          %1261 = vmatpush1.xpose.msra.mxu0 0.0
          %1262 = vmatprep.subr.mxu0 0.0
          %1263 = vmatpush1.xpose.msra.mxu0 0.0
          %1264 = vmatprep.subr.mxu0 0.0
          %1265 = vmatpush1.xpose.msra.mxu0 0.0
          %1266 = vmatprep.subr.mxu0 0.0
          %1267 = vmatpush1.xpose.msra.mxu0 0.0
          %1268 = vmatprep.subr.mxu0 0.0
          %1269 = vmatpush1.xpose.msra.mxu0 0.0
          %1270 = vmatprep.subr.mxu0 0.0
          %1271 = vmatpush1.xpose.msra.mxu0 0.0
          %1272 = vmatprep.subr.mxu0 0.0
          %1273 = vmatpush1.xpose.msra.mxu0 0.0
          %1274 = vmatprep.subr.mxu0 0.0
          %1275 = vmatpush1.xpose.msra.mxu0 0.0
          %1276 = vmatprep.subr.mxu0 0.0
          %1277 = vmatpush1.xpose.msra.mxu0 0.0
          %1278 = vmatprep.subr.mxu0 0.0
          %1279 = vmatpush1.xpose.msra.mxu0 0.0
          %1280 = vmatprep.subr.mxu0 0.0
          %1281 = vmatpush1.xpose.msra.mxu0 0.0
          %1282 = vmatprep.subr.mxu0 0.0
          %1283 = vmatpush1.xpose.msra.mxu0 0.0
          %1284 = vmatprep.subr.mxu0 0.0
          %1285 = vmatpush1.xpose.msra.mxu0 0.0
          %1286 = vmatprep.subr.mxu0 0.0
          %1287 = vmatpush1.xpose.msra.mxu0 0.0
          %1288 = vmatprep.subr.mxu0 0.0
          %1289 = vmatpush1.xpose.msra.mxu0 0.0
          %1290 = vmatprep.subr.mxu0 0.0
          %1291 = vmatpush1.xpose.msra.mxu0 0.0
          %1292 = vmatprep.mubr.f32.mxu0 0.0
          %1293 = vmatmul.mubr.f32.gmra.mrb[0].mxu0 %v1220
          %v1294 = vpop.f32.mrb[0].mxu0
          %v1295 = vadd.f32 0.0, %v1294
          %v1296 = vpop.f32.mrb[0].mxu0
          %1297 = vdwg.mxu0
          %v1298 = vadd.f32 %v1213, %v1295
          %v1299 = vld [vmem:[#allocation10] sm:$0xff]
          %v1300 = vld [vmem:[#allocation10 + $0x8] sm:$0xff]
          %vm1301 = vcmask 130048
          %v1303 = vsel %vm1301, %v1298, 0
          %1305 = vmatprep.subr.mxu0 0.0
          %1306 = vmatpush1.msra.mxu0 %v1299
          %1307 = vmatprep.subr.mxu0 0.0
          %1308 = vmatpush1.msra.mxu0 %v1300
          %1309 = vmatprep.subr.mxu0 0.0
          %1310 = vmatpush1.msra.mxu0 0.0
          %1311 = vmatprep.subr.mxu0 0.0
          %1312 = vmatpush1.msra.mxu0 0.0
          %1313 = vmatprep.subr.mxu0 0.0
          %1314 = vmatpush1.msra.mxu0 0.0
          %1315 = vmatprep.subr.mxu0 0.0
          %1316 = vmatpush1.msra.mxu0 0.0
          %1317 = vmatprep.subr.mxu0 0.0
          %1318 = vmatpush1.msra.mxu0 0.0
          %1319 = vmatprep.subr.mxu0 0.0
          %1320 = vmatpush1.msra.mxu0 0.0
          %1321 = vmatprep.subr.mxu0 0.0
          %1322 = vmatpush1.msra.mxu0 0.0
          %1323 = vmatprep.subr.mxu0 0.0
          %1324 = vmatpush1.msra.mxu0 0.0
          %1325 = vmatprep.subr.mxu0 0.0
          %1326 = vmatpush1.msra.mxu0 0.0
          %1327 = vmatprep.subr.mxu0 0.0
          %1328 = vmatpush1.msra.mxu0 0.0
          %1329 = vmatprep.subr.mxu0 0.0
          %1330 = vmatpush1.msra.mxu0 0.0
          %1331 = vmatprep.subr.mxu0 0.0
          %1332 = vmatpush1.msra.mxu0 0.0
          %1333 = vmatprep.subr.mxu0 0.0
          %1334 = vmatpush1.msra.mxu0 0.0
          %1335 = vmatprep.subr.mxu0 0.0
          %1336 = vmatpush1.msra.mxu0 0.0
          %1337 = vmatprep.subr.mxu0 0.0
          %1338 = vmatpush1.msra.mxu0 0.0
          %1339 = vmatprep.subr.mxu0 0.0
          %1340 = vmatpush1.msra.mxu0 0.0
          %1341 = vmatprep.subr.mxu0 0.0
          %1342 = vmatpush1.msra.mxu0 0.0
          %1343 = vmatprep.subr.mxu0 0.0
          %1344 = vmatpush1.msra.mxu0 0.0
          %1345 = vmatprep.subr.mxu0 0.0
          %1346 = vmatpush1.msra.mxu0 0.0
          %1347 = vmatprep.subr.mxu0 0.0
          %1348 = vmatpush1.msra.mxu0 0.0
          %1349 = vmatprep.subr.mxu0 0.0
          %1350 = vmatpush1.msra.mxu0 0.0
          %1351 = vmatprep.subr.mxu0 0.0
          %1352 = vmatpush1.msra.mxu0 0.0
          %1353 = vmatprep.subr.mxu0 0.0
          %1354 = vmatpush1.msra.mxu0 0.0
          %1355 = vmatprep.subr.mxu0 0.0
          %1356 = vmatpush1.msra.mxu0 0.0
          %1357 = vmatprep.subr.mxu0 0.0
          %1358 = vmatpush1.msra.mxu0 0.0
          %1359 = vmatprep.subr.mxu0 0.0
          %1360 = vmatpush1.msra.mxu0 0.0
          %1361 = vmatprep.subr.mxu0 0.0
          %1362 = vmatpush1.msra.mxu0 0.0
          %1363 = vmatprep.subr.mxu0 0.0
          %1364 = vmatpush1.msra.mxu0 0.0
          %1365 = vmatprep.subr.mxu0 0.0
          %1366 = vmatpush1.msra.mxu0 0.0
          %1367 = vmatprep.subr.mxu0 0.0
          %1368 = vmatpush1.msra.mxu0 0.0
          %1369 = vmatprep.mubr.f32.mxu0 0.0
          %1370 = vmatmul.mubr.f32.gmra.mrb[0].mxu0 %v1303
          %v1371 = vpop.f32.mrb[0].mxu0
          %v1372 = vadd.f32 0.0, %v1371
          %v1373 = vpop.f32.mrb[0].mxu0
          %1374 = vdwg.mxu0
          %s1375 = scalar_lea.vmem [#allocation10], 16
          %v1376 = vld [vmem:[%s1375] sm:$0xff]
          %v1377 = vld [vmem:[%s1375 + $0x8] sm:$0xff]
          %1378 = vmatprep.subr.mxu0 0.0
          %1379 = vmatpush1.msra.mxu0 %v1376
          %1380 = vmatprep.subr.mxu0 0.0
          %1381 = vmatpush1.msra.mxu0 %v1377
          %1382 = vmatprep.subr.mxu0 0.0
          %1383 = vmatpush1.msra.mxu0 0.0
          %1384 = vmatprep.subr.mxu0 0.0
          %1385 = vmatpush1.msra.mxu0 0.0
          %1386 = vmatprep.subr.mxu0 0.0
          %1387 = vmatpush1.msra.mxu0 0.0
          %1388 = vmatprep.subr.mxu0 0.0
          %1389 = vmatpush1.msra.mxu0 0.0
          %1390 = vmatprep.subr.mxu0 0.0
          %1391 = vmatpush1.msra.mxu0 0.0
          %1392 = vmatprep.subr.mxu0 0.0
          %1393 = vmatpush1.msra.mxu0 0.0
          %1394 = vmatprep.subr.mxu0 0.0
          %1395 = vmatpush1.msra.mxu0 0.0
          %1396 = vmatprep.subr.mxu0 0.0
          %1397 = vmatpush1.msra.mxu0 0.0
          %1398 = vmatprep.subr.mxu0 0.0
          %1399 = vmatpush1.msra.mxu0 0.0
          %1400 = vmatprep.subr.mxu0 0.0
          %1401 = vmatpush1.msra.mxu0 0.0
          %1402 = vmatprep.subr.mxu0 0.0
          %1403 = vmatpush1.msra.mxu0 0.0
          %1404 = vmatprep.subr.mxu0 0.0
          %1405 = vmatpush1.msra.mxu0 0.0
          %1406 = vmatprep.subr.mxu0 0.0
          %1407 = vmatpush1.msra.mxu0 0.0
          %1408 = vmatprep.subr.mxu0 0.0
          %1409 = vmatpush1.msra.mxu0 0.0
          %1410 = vmatprep.subr.mxu0 0.0
          %1411 = vmatpush1.msra.mxu0 0.0
          %1412 = vmatprep.subr.mxu0 0.0
          %1413 = vmatpush1.msra.mxu0 0.0
          %1414 = vmatprep.subr.mxu0 0.0
          %1415 = vmatpush1.msra.mxu0 0.0
          %1416 = vmatprep.subr.mxu0 0.0
          %1417 = vmatpush1.msra.mxu0 0.0
          %1418 = vmatprep.subr.mxu0 0.0
          %1419 = vmatpush1.msra.mxu0 0.0
          %1420 = vmatprep.subr.mxu0 0.0
          %1421 = vmatpush1.msra.mxu0 0.0
          %1422 = vmatprep.subr.mxu0 0.0
          %1423 = vmatpush1.msra.mxu0 0.0
          %1424 = vmatprep.subr.mxu0 0.0
          %1425 = vmatpush1.msra.mxu0 0.0
          %1426 = vmatprep.subr.mxu0 0.0
          %1427 = vmatpush1.msra.mxu0 0.0
          %1428 = vmatprep.subr.mxu0 0.0
          %1429 = vmatpush1.msra.mxu0 0.0
          %1430 = vmatprep.subr.mxu0 0.0
          %1431 = vmatpush1.msra.mxu0 0.0
          %1432 = vmatprep.subr.mxu0 0.0
          %1433 = vmatpush1.msra.mxu0 0.0
          %1434 = vmatprep.subr.mxu0 0.0
          %1435 = vmatpush1.msra.mxu0 0.0
          %1436 = vmatprep.subr.mxu0 0.0
          %1437 = vmatpush1.msra.mxu0 0.0
          %1438 = vmatprep.subr.mxu0 0.0
          %1439 = vmatpush1.msra.mxu0 0.0
          %1440 = vmatprep.subr.mxu0 0.0
          %1441 = vmatpush1.msra.mxu0 0.0
          %1442 = vmatprep.mubr.f32.mxu0 0.0
          %1443 = vmatmul.mubr.f32.gmra.mrb[0].mxu0 %v1303
          %v1444 = vpop.f32.mrb[0].mxu0
          %v1445 = vadd.f32 0.0, %v1444
          %v1446 = vpop.f32.mrb[0].mxu0
          %1447 = vdwg.mxu0
          %s1448 = scalar_lea.vmem [#allocation10], 32
          %v1449 = vld [vmem:[%s1448] sm:$0xff]
          %v1450 = vld [vmem:[%s1448 + $0x8] sm:$0xff]
          %1451 = vmatprep.subr.mxu0 0.0
          %1452 = vmatpush1.msra.mxu0 %v1449
          %1453 = vmatprep.subr.mxu0 0.0
          %1454 = vmatpush1.msra.mxu0 %v1450
          %1455 = vmatprep.subr.mxu0 0.0
          %1456 = vmatpush1.msra.mxu0 0.0
          %1457 = vmatprep.subr.mxu0 0.0
          %1458 = vmatpush1.msra.mxu0 0.0
          %1459 = vmatprep.subr.mxu0 0.0
          %1460 = vmatpush1.msra.mxu0 0.0
          %1461 = vmatprep.subr.mxu0 0.0
          %1462 = vmatpush1.msra.mxu0 0.0
          %1463 = vmatprep.subr.mxu0 0.0
          %1464 = vmatpush1.msra.mxu0 0.0
          %1465 = vmatprep.subr.mxu0 0.0
          %1466 = vmatpush1.msra.mxu0 0.0
          %1467 = vmatprep.subr.mxu0 0.0
          %1468 = vmatpush1.msra.mxu0 0.0
          %1469 = vmatprep.subr.mxu0 0.0
          %1470 = vmatpush1.msra.mxu0 0.0
          %1471 = vmatprep.subr.mxu0 0.0
          %1472 = vmatpush1.msra.mxu0 0.0
          %1473 = vmatprep.subr.mxu0 0.0
          %1474 = vmatpush1.msra.mxu0 0.0
          %1475 = vmatprep.subr.mxu0 0.0
          %1476 = vmatpush1.msra.mxu0 0.0
          %1477 = vmatprep.subr.mxu0 0.0
          %1478 = vmatpush1.msra.mxu0 0.0
          %1479 = vmatprep.subr.mxu0 0.0
          %1480 = vmatpush1.msra.mxu0 0.0
          %1481 = vmatprep.subr.mxu0 0.0
          %1482 = vmatpush1.msra.mxu0 0.0
          %1483 = vmatprep.subr.mxu0 0.0
          %1484 = vmatpush1.msra.mxu0 0.0
          %1485 = vmatprep.subr.mxu0 0.0
          %1486 = vmatpush1.msra.mxu0 0.0
          %1487 = vmatprep.subr.mxu0 0.0
          %1488 = vmatpush1.msra.mxu0 0.0
          %1489 = vmatprep.subr.mxu0 0.0
          %1490 = vmatpush1.msra.mxu0 0.0
          %1491 = vmatprep.subr.mxu0 0.0
          %1492 = vmatpush1.msra.mxu0 0.0
          %1493 = vmatprep.subr.mxu0 0.0
          %1494 = vmatpush1.msra.mxu0 0.0
          %1495 = vmatprep.subr.mxu0 0.0
          %1496 = vmatpush1.msra.mxu0 0.0
          %1497 = vmatprep.subr.mxu0 0.0
          %1498 = vmatpush1.msra.mxu0 0.0
          %1499 = vmatprep.subr.mxu0 0.0
          %1500 = vmatpush1.msra.mxu0 0.0
          %1501 = vmatprep.subr.mxu0 0.0
          %1502 = vmatpush1.msra.mxu0 0.0
          %1503 = vmatprep.subr.mxu0 0.0
          %1504 = vmatpush1.msra.mxu0 0.0
          %1505 = vmatprep.subr.mxu0 0.0
          %1506 = vmatpush1.msra.mxu0 0.0
          %1507 = vmatprep.subr.mxu0 0.0
          %1508 = vmatpush1.msra.mxu0 0.0
          %1509 = vmatprep.subr.mxu0 0.0
          %1510 = vmatpush1.msra.mxu0 0.0
          %1511 = vmatprep.subr.mxu0 0.0
          %1512 = vmatpush1.msra.mxu0 0.0
          %1513 = vmatprep.subr.mxu0 0.0
          %1514 = vmatpush1.msra.mxu0 0.0
          %1515 = vmatprep.mubr.f32.mxu0 0.0
          %1516 = vmatmul.mubr.f32.gmra.mrb[0].mxu0 %v1303
          %v1517 = vpop.f32.mrb[0].mxu0
          %v1518 = vadd.f32 0.0, %v1517
          %v1519 = vpop.f32.mrb[0].mxu0
          %1520 = vdwg.mxu0
          %v1522 = vrot.slane %v1445, 7
          %v1525 = vrot.slane %v1518, 6
          %vm1527 = vcmask 1040384
          %v1528 = vsel %vm1527, %v1372, %v1522
          %vm1529 = vcmask 1041408
          %v1530 = vsel %vm1529, %v1528, %v1525
          %1531 = vst.msk [vmem:[#allocation14] sm:$0x7] %vm969, %v1530
        $region76: #{tpu_custom_call.1} parent=47 // pred_fallthru
          _
        // Predicated region
        $region77: #{tpu_custom_call.1} parent=47 // pred_check
          %p1532 = pneg %p195
        $region78: #{tpu_custom_call.1} parent=47 // pred_check_branch
          %1534 = sbr.rel (%p1532) target = $region80
        $region79: #{tpu_custom_call.1} parent=47 // pred_region
          %s1536 = ssub.s32 16, 16
          %1537 = vsyncadd [#allocation6], %s1536
          %s1539 = sshll.u32 [#allocation13], 4
          %s1540 = int_to_ptr.vmem [resolvable:$true] %s1539
          %1542 = dma.vmem_to_hbm [thread:$0]  %s1540, 16, %s7, [#allocation6]
        $region80: #{tpu_custom_call.1} parent=47 // pred_fallthru
          _
        // Predicated region
        $region81: #{tpu_custom_call.1} parent=47 // pred_check
          %p1543 = pneg %p216
        $region82: #{tpu_custom_call.1} parent=47 // pred_check_branch
          %1545 = sbr.rel (%p1543) target = $region84
        $region83: #{tpu_custom_call.1} parent=47 // pred_region
          %s1547 = ssub.s32 64, 64
          %1548 = vsyncadd [#allocation15], %s1547
          %s1550 = sshll.u32 [#allocation14], 4
          %s1551 = int_to_ptr.vmem [resolvable:$true] %s1550
          %1553 = dma.vmem_to_hbm [thread:$0]  %s1551, 64, %s8, [#allocation15]
        $region84: #{tpu_custom_call.1} parent=47 // pred_fallthru
          _
        // Predicated region
        $region85: #{tpu_custom_call.1} parent=47 // pred_check
          %p1554 = pneg %p195
        $region86: #{tpu_custom_call.1} parent=47 // pred_check_branch
          %1556 = sbr.rel (%p1554) target = $region88
        $region87: #{tpu_custom_call.1} parent=47 // pred_region
          %1557 = dma.done [#allocation6], 16
        $region88: #{tpu_custom_call.1} parent=47 // pred_fallthru
          _
        // Predicated region
        $region89: #{tpu_custom_call.1} parent=47 // pred_check
          %p1558 = pneg %p216
        $region90: #{tpu_custom_call.1} parent=47 // pred_check_branch
          %1560 = sbr.rel (%p1558) target = $region92
        $region91: #{tpu_custom_call.1} parent=47 // pred_region
          %1561 = dma.done [#allocation15], 64
        $region92: #{tpu_custom_call.1} parent=47 // pred_fallthru
          _
      $region48: #{tpu_custom_call.1} parent=5 // pred_fallthru
        _
      %p1562 = scmp.le.s32.totalorder 2, %s20
      // Predicated region
      $region93: #{tpu_custom_call.1} parent=5 // pred_check
        %p1563 = pneg %p1562
      $region94: #{tpu_custom_call.1} parent=5 // pred_check_branch
        %1565 = sbr.rel (%p1563) target = $region96
      $region95: #{tpu_custom_call.1} parent=5 // pred_region
        %s1566 = ssub.s32 %s20, 2
      $region96: #{tpu_custom_call.1} parent=5 // pred_fallthru
        _
    $region6: #{tpu_custom_call.1} parent=1 // loop_footer
      %s24 = sadd.s32 1, %s20
    $region7: #{tpu_custom_call.1} parent=1 // loop_footer_branch
      %19 = sbr.rel target = $region3
    $region8: #{tpu_custom_call.1} parent=1 // loop_exit
      _
    %1567 = vsyncpa [#allocation5], 1
    %s1568 = scalar_lea.sflag [#allocation5], 1
    %1569 = vsyncpa %s1568, 1
    %1570 = vsyncpa [#allocation8], 1
    %1571 = vsyncpa [#allocation11], 1
    %1572 = vsyncpa [#allocation6], 1
    %s1573 = scalar_lea.sflag [#allocation6], 1
    %1574 = vsyncpa %s1573, 1
    %1575 = vsyncpa [#allocation15], 1

</llo_original>
